<compile_context>
chip_gen: v6e
topology: v6e:2x2x1
jax: 0.10.0
libtpu: 0.0.40
codegen_flags: <defaults>
</compile_context>

<pallas_src>
import functools

import jax
import jax.numpy as jnp
from jax.experimental import pallas as pl
from jax.experimental.pallas import tpu as pltpu

LANE = 128          # lane width: hidden / fc-output padding
BATCH_ALIGN = 16    # bf16 sublane packing -> batch tile must be a multiple of 16


def _round_up(x, m):
    return (x + m - 1) // m * m


def _sigmoid(x):
    # exp and the approximate reciprocal both execute on the EUP slot, keeping
    # the divide off the VPU on the serial per-step dependency chain.
    return pl.reciprocal(1.0 + jnp.exp(-x), approx=True)


# ---------------------------------------------------------------------------
# Kernel
# ---------------------------------------------------------------------------
def _gru_phase(h, x_ref, x_off, gx_dst_ref, gx_src_ref, blk_idx,
               wi, bi, wh, bhn, *, tt, bt, hp, d, seq_len, masked):
    """One software-pipeline phase.

    Projects this phase's tt timesteps of x into `gx_dst_ref` (consumed one
    phase later) while running the serial GRU recurrence over the tt timesteps
    projected one phase earlier into `gx_src_ref`.  Distinct scratch refs and
    static offsets -> no aliasing between the projection stores and the
    recurrence loads, so the independent projection GEMM can be interleaved
    into the fill/drain bubbles of the latency-bound h @ Wh chain.
    """
    # (a) hoisted input projection: ONE (tt*bt, D) x (D, 3Hp) GEMM
    xh = x_ref[pl.ds(x_off, tt), :, :].reshape(tt * bt, d)     # layout-preserving
    gx_dst_ref[...] = (jnp.dot(xh, wi, preferred_element_type=jnp.float32) + bi)

    # (b) serial recurrence.  Static Python loop (not fori_loop): keeps the
    #     recurrence straight-line in the *same basic block* as the projection
    #     above; per-step vreg pressure stays bounded because gx_j is streamed
    #     from VMEM scratch each step.
    n_tail = seq_len % tt
    for j in range(tt):
        gx_j = gx_src_ref[pl.ds(j * bt, bt), :]                 # (bt, 3hp) f32
        gh = jnp.dot(h.astype(jnp.bfloat16), wh,
                     preferred_element_type=jnp.float32)        # (bt, 3hp) f32
        rz = _sigmoid(gx_j[:, :2 * hp] + gh[:, :2 * hp])
        r, z = rz[:, :hp], rz[:, hp:]
        n = jnp.tanh(gx_j[:, 2 * hp:] + r * (gh[:, 2 * hp:] + bhn))
        h_new = n + z * (h - n)                                 # == (1-z)*n + z*h
        if masked and n_tail and j >= n_tail:
            # only the phase owning the ragged tail emits these selects, and
            # only for the statically-possibly-padded steps
            h_new = jnp.where(blk_idx * tt + j < seq_len, h_new, h)
        h = h_new
    return h


def _gru_kernel(x_ref, wi_ref, wh_ref, bi_ref, bhn_ref, fcw_ref, fcb_ref,
                out_ref, h_ref, gxa_ref, gxb_ref, *, seq_len):
    tt2, bt, d = x_ref.shape
    tt = tt2 // 2                               # per-phase time block
    hp = h_ref.shape[1]
    nt = -(-seq_len // tt)                      # number of real tt-sized blocks
    n_tail = seq_len % tt
    partial_parity = ((nt - 1) % 2) if n_tail else -1

    k = pl.program_id(1)
    last = pl.num_programs(1) - 1

    @pl.when(k == 0)
    def _init():
        h_ref[...] = jnp.zeros_like(h_ref)

    wi = wi_ref[...]                            # (D, 3hp)  bf16
    wh = wh_ref[...]                            # (hp, 3hp) bf16
    bi = bi_ref[...]                            # (1, 3hp)  f32
    bhn = jnp.broadcast_to(bhn_ref[...], (bt, hp))   # hoisted broadcast
    h_prev = h_ref[...]                         # (bt, hp)  f32

    # Shifted software pipeline (one extra "drain" grid step at k == last):
    #   phase 1: project block 2k   -> gxA | recur block 2k-1 from gxB
    #   phase 2: project block 2k+1 -> gxB | recur block 2k   from gxA
    # Warm-up (k==0, block -1), the drain step's bogus blocks and fully-padded
    # tail blocks are discarded by the scalar commit-selects below.
    p1 = 2 * k - 1
    p2 = 2 * k

    h1 = _gru_phase(h_prev, x_ref, 0, gxa_ref, gxb_ref, p1, wi, bi, wh, bhn,
                    tt=tt, bt=bt, hp=hp, d=d, seq_len=seq_len,
                    masked=(partial_parity == 1))
    h1 = jnp.where(jnp.logical_and(k >= 1, p1 * tt < seq_len), h1, h_prev)

    h2 = _gru_phase(h1, x_ref, tt, gxb_ref, gxa_ref, p2, wi, bi, wh, bhn,
                    tt=tt, bt=bt, hp=hp, d=d, seq_len=seq_len,
                    masked=(partial_parity == 0))
    h2 = jnp.where(p2 * tt < seq_len, h2, h1)

    h_ref[...] = h2

    @pl.when(k == last)
    def _finish():
        # At the drain step h2 == h1 == hidden state after the last real block.
        # TODO(synk): Dropout(p=0.5) is identity in eval mode; train-mode RNG
        # mask intentionally omitted.
        out_ref[...] = (jnp.dot(h2.astype(jnp.bfloat16), fcw_ref[...],
                                preferred_element_type=jnp.float32)
                        + fcb_ref[...])


# ---------------------------------------------------------------------------
# Parameter packing (done ONCE): transpose, fuse gates, pad, cast to bf16
# ---------------------------------------------------------------------------
def pack_params(p):
    three_h, d = p["w_ih"].shape
    h = three_h // 3
    hp = _round_up(h, LANE)
    op = LANE

    w_ir, w_iz, w_in = jnp.split(p["w_ih"], 3, axis=0)      # (H, D) each
    w_hr, w_hz, w_hn = jnp.split(p["w_hh"], 3, axis=0)      # (H, H) each
    b_ir, b_iz, b_in = jnp.split(p["b_ih"], 3)
    b_hr, b_hz, b_hn = jnp.split(p["b_hh"], 3)

    pad_cols = lambda m, c: jnp.pad(m, ((0, 0), (0, c - m.shape[1])))
    pad_rows = lambda m, r: jnp.pad(m, ((0, r - m.shape[0]), (0, 0)))
    padv = lambda v: jnp.pad(v, (0, hp - h))[None, :]

    wi = jnp.concatenate([pad_cols(w_ir.T, hp), pad_cols(w_iz.T, hp),
                          pad_cols(w_in.T, hp)], axis=1)                 # (D, 3Hp)
    wh = pad_rows(jnp.concatenate([pad_cols(w_hr.T, hp), pad_cols(w_hz.T, hp),
                                   pad_cols(w_hn.T, hp)], axis=1), hp)   # (Hp, 3Hp)
    bi = jnp.concatenate([padv(b_ir + b_hr), padv(b_iz + b_hz),
                          padv(b_in)], axis=1)                           # (1, 3Hp)
    bhn = padv(b_hn)                                                     # (1, Hp)
    fcw = pad_rows(pad_cols(p["fc_w"].T, op), hp)                        # (Hp, OP)
    fcb = jnp.pad(p["fc_b"][None, :], ((0, 0), (0, op - 1)))             # (1, OP)

    return dict(
        wi=wi.astype(jnp.bfloat16), wh=wh.astype(jnp.bfloat16),
        bi=bi.astype(jnp.float32), bhn=bhn.astype(jnp.float32),
        fcw=fcw.astype(jnp.bfloat16), fcb=fcb.astype(jnp.float32),
        H=h, Hp=hp, D=d, OP=op)


# ---------------------------------------------------------------------------
# Forward wrapper
# ---------------------------------------------------------------------------
def _choose_bt(batch, *, max_bt=128):
    """Batch tile: multiple of 16 (bf16 sublane packing), as large as possible
    up to max_bt; when the batch allows, keep >= 2 tiles so the 'parallel'
    batch grid axis can feed both v7x TensorCores."""
    bp = _round_up(batch, BATCH_ALIGN)
    if bp <= max_bt:
        if bp >= 4 * BATCH_ALIGN:
            return _round_up(bp // 2, BATCH_ALIGN)
        return bp
    return max_bt


def gru_model_forward(x_btd, packed, *, t_block=16, max_bt=128):
    B, T, D = x_btd.shape
    hp, op = packed["Hp"], packed["OP"]

    tt = max(1, min(t_block, -(-T // 2)))    # per-phase time block (2*tt / grid step)
    nt = -(-T // tt)                         # real tt-blocks
    ns = (nt + 1) // 2                       # x superblocks of 2*tt timesteps
    tp = 2 * tt * ns

    bt = _choose_bt(B, max_bt=max_bt)
    bp = _round_up(B, bt)
    nb = bp // bt

    # ONE fused layout pass: batch-first -> time-major, pad T/B, cast to bf16.
    x = jnp.transpose(x_btd, (1, 0, 2))                       # (T, B, D)
    x = jnp.pad(x, ((0, tp - T), (0, bp - B), (0, 0))).astype(jnp.bfloat16)

    kernel = functools.partial(_gru_kernel, seq_len=T)

    def _const(shape):
        idx = lambda b, k: (0,) * len(shape)
        try:
            # invariant operands: block index never changes -> single-buffer
            return pl.BlockSpec(shape, idx,
                                pipeline_mode=pl.Buffered(buffer_count=1))
        except TypeError:
            return pl.BlockSpec(shape, idx)

    out = pl.pallas_call(
        kernel,
        out_shape=jax.ShapeDtypeStruct((bp, op), jnp.float32),
        grid_spec=pltpu.PrefetchScalarGridSpec(
            num_scalar_prefetch=0,
            grid=(nb, ns + 1),               # +1 drain step for the shifted pipeline
            in_specs=[
                pl.BlockSpec((2 * tt, bt, D),
                             lambda b, k: (jnp.minimum(k, ns - 1), b, 0)),
                _const((D, 3 * hp)),         # Wi_cat  (bf16)
                _const((hp, 3 * hp)),        # Wh_cat  (bf16)
                _const((1, 3 * hp)),         # b_i (+ folded b_hr / b_hz)
                _const((1, hp)),             # b_hn
                _const((hp, op)),            # fc weight, lane-dense 128 outputs
                _const((1, op)),             # fc bias
            ],
            out_specs=pl.BlockSpec((bt, op), lambda b, k: (b, 0)),
            scratch_shapes=[
                pltpu.VMEM((bt, hp), jnp.float32),            # hidden-state carry
                pltpu.VMEM((tt * bt, 3 * hp), jnp.float32),   # gx ping buffer
                pltpu.VMEM((tt * bt, 3 * hp), jnp.float32),   # gx pong buffer
            ],
        ),
        compiler_params=pltpu.CompilerParams(
            dimension_semantics=("parallel", "arbitrary"),
            # <= 48 MiB: headroom on v7x (64 MiB physical VMEM), and well above
            # what these tiles need on v5e/v6e.
            vmem_limit_bytes=48 * 1024 * 1024),
    )(x, packed["wi"], packed["wh"], packed["bi"], packed["bhn"],
      packed["fcw"], packed["fcb"])
    return out[:B, :1]


# ---------------------------------------------------------------------------
# Init + pure-JAX reference
# ---------------------------------------------------------------------------
def init_params(key, input_dim, hidden_dim):
    """PyTorch-style nn.GRU / nn.Linear params, uniform(-1/sqrt(H), 1/sqrt(H))."""
    ks = jax.random.split(key, 6)
    s = 1.0 / (hidden_dim ** 0.5)
    u = lambda k, shape: jax.random.uniform(k, shape, jnp.float32, -s, s)
    H, D = hidden_dim, input_dim
    return dict(
        w_ih=u(ks[0], (3 * H, D)),   # stacked [r | z | n], like torch weight_ih_l0
        w_hh=u(ks[1], (3 * H, H)),
        b_ih=u(ks[2], (3 * H,)),
        b_hh=u(ks[3], (3 * H,)),
        fc_w=u(ks[4], (1, H)),
        fc_b=u(ks[5], (1,)),
    )


def _reference_forward(x_btd, p):
    """f32 pure-JAX reference of the PyTorch GRUModel forward (eval mode)."""
    w_ir, w_iz, w_in = jnp.split(p["w_ih"], 3, axis=0)
    w_hr, w_hz, w_hn = jnp.split(p["w_hh"], 3, axis=0)
    b_ir, b_iz, b_in = jnp.split(p["b_ih"], 3)
    b_hr, b_hz, b_hn = jnp.split(p["b_hh"], 3)
    B = x_btd.shape[0]
    H = p["w_hh"].shape[1]
    h0 = jnp.zeros((B, H), jnp.float32)

    def step(h, x):
        r = jax.nn.sigmoid(x @ w_ir.T + b_ir + h @ w_hr.T + b_hr)
        z = jax.nn.sigmoid(x @ w_iz.T + b_iz + h @ w_hz.T + b_hz)
        n = jnp.tanh(x @ w_in.T + b_in + r * (h @ w_hn.T + b_hn))
        return (1.0 - z) * n + z * h, None

    h_last, _ = jax.lax.scan(step, h0, jnp.transpose(x_btd, (1, 0, 2)))
    return h_last @ p["fc_w"].T + p["fc_b"]


if __name__ == "__main__":
    B, T, D, H = 2, 8, 16, 32
    key = jax.random.PRNGKey(0)
    kx, kp = jax.random.split(key)
    x = jax.random.normal(kx, (B, T, D), jnp.float32)
    params = init_params(kp, D, H)
    packed = pack_params(params)        # one-time transpose / fuse / pad / bf16 cast

    out = jax.block_until_ready(gru_model_forward(x, packed))
    ref = _reference_forward(x, params)

    assert out.shape == (B, 1)
    # bf16 MXU operands + EUP approx-reciprocal sigmoid vs f32 reference
    assert jnp.allclose(out, ref, atol=3e-2, rtol=3e-2), (out, ref)
    print("KERNEL_OK")
</pallas_src>

<mosaic_0001>
module attributes {stable_mosaic.version = 11 : i64} {
  func.func @_gru_kernel(%arg0: i32, %arg1: i32, %arg2: memref<8x16x16xbf16, #tpu.memory_space<vmem>>, %arg3: memref<16x384xbf16, #tpu.memory_space<vmem>>, %arg4: memref<128x384xbf16, #tpu.memory_space<vmem>>, %arg5: memref<1x384xf32, #tpu.memory_space<vmem>>, %arg6: memref<1x128xf32, #tpu.memory_space<vmem>>, %arg7: memref<128x128xbf16, #tpu.memory_space<vmem>>, %arg8: memref<1x128xf32, #tpu.memory_space<vmem>>, %arg9: memref<16x128xf32, #tpu.memory_space<vmem>>, %arg10: memref<16x128xf32, #tpu.memory_space<vmem>>, %arg11: memref<64x384xf32, #tpu.memory_space<vmem>>, %arg12: memref<64x384xf32, #tpu.memory_space<vmem>>) attributes {dimension_semantics = [#tpu.dimension_semantics<parallel>, #tpu.dimension_semantics<arbitrary>], iteration_bounds = array<i64: 1, 2>, scalar_prefetch = 0 : i64, scratch_operands = 3 : i64, tpu.core_type = #tpu.core_type<tc>, window_params = [{transform_indices = @transform_0, window_bounds = array<i64: 8, 16, 16>}, {pipeline_mode = #tpu.pipeline_mode<synchronous>, transform_indices = @transform_1, window_bounds = array<i64: 16, 384>}, {pipeline_mode = #tpu.pipeline_mode<synchronous>, transform_indices = @transform_2, window_bounds = array<i64: 128, 384>}, {pipeline_mode = #tpu.pipeline_mode<synchronous>, transform_indices = @transform_3, window_bounds = array<i64: 1, 384>}, {pipeline_mode = #tpu.pipeline_mode<synchronous>, transform_indices = @transform_4, window_bounds = array<i64: 1, 128>}, {pipeline_mode = #tpu.pipeline_mode<synchronous>, transform_indices = @transform_5, window_bounds = array<i64: 128, 128>}, {pipeline_mode = #tpu.pipeline_mode<synchronous>, transform_indices = @transform_6, window_bounds = array<i64: 1, 128>}, {transform_indices = @transform_7, window_bounds = array<i64: 16, 128>}]} {
    %c0_i32 = arith.constant 0 : i32
    %0 = arith.cmpi eq, %arg1, %c0_i32 : i32
    %1 = arith.extui %0 : i1 to i32
    %c0_i32_0 = arith.constant 0 : i32
    %2 = arith.cmpi ne, %1, %c0_i32_0 : i32
    scf.if %2 {
      %cst_65 = arith.constant 0.000000e+00 : f32
      %221 = vector.broadcast %cst_65 : f32 to vector<16x128xf32>
      %c0_66 = arith.constant 0 : index
      %c0_67 = arith.constant 0 : index
      %222 = vector.load %arg10[%c0_66, %c0_67] : memref<16x128xf32, #tpu.memory_space<vmem>>, vector<16x128xf32>
      tpu.vector_store %arg10[%c0_66, %c0_67], %221 {strides = array<i32>} : memref<16x128xf32, #tpu.memory_space<vmem>>, vector<16x128xf32>,
    } else {
    }
    %c0 = arith.constant 0 : index
    %c0_1 = arith.constant 0 : index
    %3 = vector.load %arg3[%c0, %c0_1] : memref<16x384xbf16, #tpu.memory_space<vmem>>, vector<16x384xbf16>
    %c0_2 = arith.constant 0 : index
    %c0_3 = arith.constant 0 : index
    %4 = vector.load %arg4[%c0_2, %c0_3] : memref<128x384xbf16, #tpu.memory_space<vmem>>, vector<128x384xbf16>
    %c0_4 = arith.constant 0 : index
    %c0_5 = arith.constant 0 : index
    %5 = vector.load %arg5[%c0_4, %c0_5] : memref<1x384xf32, #tpu.memory_space<vmem>>, vector<1x384xf32>
    %c0_6 = arith.constant 0 : index
    %c0_7 = arith.constant 0 : index
    %6 = vector.load %arg6[%c0_6, %c0_7] : memref<1x128xf32, #tpu.memory_space<vmem>>, vector<1x128xf32>
    %7 = vector.shape_cast %6 : vector<1x128xf32> to vector<1x128xf32>
    %8 = vector.broadcast %7 : vector<1x128xf32> to vector<16x128xf32>
    %c0_8 = arith.constant 0 : index
    %c0_9 = arith.constant 0 : index
    %9 = vector.load %arg10[%c0_8, %c0_9] : memref<16x128xf32, #tpu.memory_space<vmem>>, vector<16x128xf32>
    %c2_i32 = arith.constant 2 : i32
    %10 = arith.muli %c2_i32, %arg1 : i32
    %c1_i32 = arith.constant 1 : i32
    %11 = arith.subi %10, %c1_i32 : i32
    %c2_i32_10 = arith.constant 2 : i32
    %12 = arith.muli %c2_i32_10, %arg1 : i32
    %c0_11 = arith.constant 0 : index
    %c0_12 = arith.constant 0 : index
    %c0_13 = arith.constant 0 : index
    %13 = vector.load %arg2[%c0_11, %c0_12, %c0_13] : memref<8x16x16xbf16, #tpu.memory_space<vmem>>, vector<4x16x16xbf16>
    %14 = vector.shape_cast %13 : vector<4x16x16xbf16> to vector<64x16xbf16>
    %cst = arith.constant dense<0.000000e+00> : vector<64x384xf32>
    %15 = tpu.matmul %14, %3, %cst {dimension_numbers = #tpu.dot_dimension_numbers<[1], [0], [0], [1], [0, 0, 1, 1], [], []>} : vector<64x16xbf16>, vector<16x384xbf16>, vector<64x384xf32> -> vector<64x384xf32>
    %16 = vector.broadcast %5 : vector<1x384xf32> to vector<64x384xf32>
    %17 = arith.addf %15, %16 : vector<64x384xf32>
    %c0_14 = arith.constant 0 : index
    %c0_15 = arith.constant 0 : index
    %18 = vector.load %arg11[%c0_14, %c0_15] : memref<64x384xf32, #tpu.memory_space<vmem>>, vector<64x384xf32>
    tpu.vector_store %arg11[%c0_14, %c0_15], %17 {strides = array<i32>} : memref<64x384xf32, #tpu.memory_space<vmem>>, vector<64x384xf32>,
    %c0_16 = arith.constant 0 : index
    %c0_17 = arith.constant 0 : index
    %19 = vector.load %arg12[%c0_16, %c0_17] : memref<64x384xf32, #tpu.memory_space<vmem>>, vector<16x384xf32>
    %20 = arith.truncf %9 : vector<16x128xf32> to vector<16x128xbf16>
    %cst_18 = arith.constant dense<0.000000e+00> : vector<16x384xf32>
    %21 = tpu.matmul %20, %4, %cst_18 {dimension_numbers = #tpu.dot_dimension_numbers<[1], [0], [0], [1], [0, 0, 1, 1], [], []>} : vector<16x128xbf16>, vector<128x384xbf16>, vector<16x384xf32> -> vector<16x384xf32>
    %22 = vector.extract_strided_slice %19 {offsets = [0, 0], sizes = [16, 256], strides = [1, 1]} : vector<16x384xf32> to vector<16x256xf32>
    %23 = vector.extract_strided_slice %21 {offsets = [0, 0], sizes = [16, 256], strides = [1, 1]} : vector<16x384xf32> to vector<16x256xf32>
    %24 = arith.addf %22, %23 : vector<16x256xf32>
    %cst_19 = arith.constant 0.000000e+00 : f32
    %25 = vector.broadcast %cst_19 : f32 to vector<16x256xf32>
    %26 = arith.subf %25, %24 : vector<16x256xf32>
    %27 = math.exp %26 : vector<16x256xf32>
    %cst_20 = arith.constant 1.000000e+00 : f32
    %28 = vector.broadcast %cst_20 : f32 to vector<16x256xf32>
    %29 = arith.addf %28, %27 : vector<16x256xf32>
    %30 = tpu.reciprocal %29 {approx = true} : vector<16x256xf32> -> vector<16x256xf32>
    %31 = vector.extract_strided_slice %30 {offsets = [0, 0], sizes = [16, 128], strides = [1, 1]} : vector<16x256xf32> to vector<16x128xf32>
    %32 = vector.extract_strided_slice %30 {offsets = [0, 128], sizes = [16, 128], strides = [1, 1]} : vector<16x256xf32> to vector<16x128xf32>
    %33 = vector.extract_strided_slice %19 {offsets = [0, 256], sizes = [16, 128], strides = [1, 1]} : vector<16x384xf32> to vector<16x128xf32>
    %34 = vector.extract_strided_slice %21 {offsets = [0, 256], sizes = [16, 128], strides = [1, 1]} : vector<16x384xf32> to vector<16x128xf32>
    %35 = arith.addf %34, %8 : vector<16x128xf32>
    %36 = arith.mulf %31, %35 : vector<16x128xf32>
    %37 = arith.addf %33, %36 : vector<16x128xf32>
    %38 = math.tanh %37 : vector<16x128xf32>
    %39 = arith.subf %9, %38 : vector<16x128xf32>
    %40 = arith.mulf %32, %39 : vector<16x128xf32>
    %41 = arith.addf %38, %40 : vector<16x128xf32>
    %c16 = arith.constant 16 : index
    %c0_21 = arith.constant 0 : index
    %42 = vector.load %arg12[%c16, %c0_21] : memref<64x384xf32, #tpu.memory_space<vmem>>, vector<16x384xf32>
    %43 = arith.truncf %41 : vector<16x128xf32> to vector<16x128xbf16>
    %cst_22 = arith.constant dense<0.000000e+00> : vector<16x384xf32>
    %44 = tpu.matmul %43, %4, %cst_22 {dimension_numbers = #tpu.dot_dimension_numbers<[1], [0], [0], [1], [0, 0, 1, 1], [], []>} : vector<16x128xbf16>, vector<128x384xbf16>, vector<16x384xf32> -> vector<16x384xf32>
    %45 = vector.extract_strided_slice %42 {offsets = [0, 0], sizes = [16, 256], strides = [1, 1]} : vector<16x384xf32> to vector<16x256xf32>
    %46 = vector.extract_strided_slice %44 {offsets = [0, 0], sizes = [16, 256], strides = [1, 1]} : vector<16x384xf32> to vector<16x256xf32>
    %47 = arith.addf %45, %46 : vector<16x256xf32>
    %cst_23 = arith.constant 0.000000e+00 : f32
    %48 = vector.broadcast %cst_23 : f32 to vector<16x256xf32>
    %49 = arith.subf %48, %47 : vector<16x256xf32>
    %50 = math.exp %49 : vector<16x256xf32>
    %cst_24 = arith.constant 1.000000e+00 : f32
    %51 = vector.broadcast %cst_24 : f32 to vector<16x256xf32>
    %52 = arith.addf %51, %50 : vector<16x256xf32>
    %53 = tpu.reciprocal %52 {approx = true} : vector<16x256xf32> -> vector<16x256xf32>
    %54 = vector.extract_strided_slice %53 {offsets = [0, 0], sizes = [16, 128], strides = [1, 1]} : vector<16x256xf32> to vector<16x128xf32>
    %55 = vector.extract_strided_slice %53 {offsets = [0, 128], sizes = [16, 128], strides = [1, 1]} : vector<16x256xf32> to vector<16x128xf32>
    %56 = vector.extract_strided_slice %42 {offsets = [0, 256], sizes = [16, 128], strides = [1, 1]} : vector<16x384xf32> to vector<16x128xf32>
    %57 = vector.extract_strided_slice %44 {offsets = [0, 256], sizes = [16, 128], strides = [1, 1]} : vector<16x384xf32> to vector<16x128xf32>
    %58 = arith.addf %57, %8 : vector<16x128xf32>
    %59 = arith.mulf %54, %58 : vector<16x128xf32>
    %60 = arith.addf %56, %59 : vector<16x128xf32>
    %61 = math.tanh %60 : vector<16x128xf32>
    %62 = arith.subf %41, %61 : vector<16x128xf32>
    %63 = arith.mulf %55, %62 : vector<16x128xf32>
    %64 = arith.addf %61, %63 : vector<16x128xf32>
    %c32 = arith.constant 32 : index
    %c0_25 = arith.constant 0 : index
    %65 = vector.load %arg12[%c32, %c0_25] : memref<64x384xf32, #tpu.memory_space<vmem>>, vector<16x384xf32>
    %66 = arith.truncf %64 : vector<16x128xf32> to vector<16x128xbf16>
    %cst_26 = arith.constant dense<0.000000e+00> : vector<16x384xf32>
    %67 = tpu.matmul %66, %4, %cst_26 {dimension_numbers = #tpu.dot_dimension_numbers<[1], [0], [0], [1], [0, 0, 1, 1], [], []>} : vector<16x128xbf16>, vector<128x384xbf16>, vector<16x384xf32> -> vector<16x384xf32>
    %68 = vector.extract_strided_slice %65 {offsets = [0, 0], sizes = [16, 256], strides = [1, 1]} : vector<16x384xf32> to vector<16x256xf32>
    %69 = vector.extract_strided_slice %67 {offsets = [0, 0], sizes = [16, 256], strides = [1, 1]} : vector<16x384xf32> to vector<16x256xf32>
    %70 = arith.addf %68, %69 : vector<16x256xf32>
    %cst_27 = arith.constant 0.000000e+00 : f32
    %71 = vector.broadcast %cst_27 : f32 to vector<16x256xf32>
    %72 = arith.subf %71, %70 : vector<16x256xf32>
    %73 = math.exp %72 : vector<16x256xf32>
    %cst_28 = arith.constant 1.000000e+00 : f32
    %74 = vector.broadcast %cst_28 : f32 to vector<16x256xf32>
    %75 = arith.addf %74, %73 : vector<16x256xf32>
    %76 = tpu.reciprocal %75 {approx = true} : vector<16x256xf32> -> vector<16x256xf32>
    %77 = vector.extract_strided_slice %76 {offsets = [0, 0], sizes = [16, 128], strides = [1, 1]} : vector<16x256xf32> to vector<16x128xf32>
    %78 = vector.extract_strided_slice %76 {offsets = [0, 128], sizes = [16, 128], strides = [1, 1]} : vector<16x256xf32> to vector<16x128xf32>
    %79 = vector.extract_strided_slice %65 {offsets = [0, 256], sizes = [16, 128], strides = [1, 1]} : vector<16x384xf32> to vector<16x128xf32>
    %80 = vector.extract_strided_slice %67 {offsets = [0, 256], sizes = [16, 128], strides = [1, 1]} : vector<16x384xf32> to vector<16x128xf32>
    %81 = arith.addf %80, %8 : vector<16x128xf32>
    %82 = arith.mulf %77, %81 : vector<16x128xf32>
    %83 = arith.addf %79, %82 : vector<16x128xf32>
    %84 = math.tanh %83 : vector<16x128xf32>
    %85 = arith.subf %64, %84 : vector<16x128xf32>
    %86 = arith.mulf %78, %85 : vector<16x128xf32>
    %87 = arith.addf %84, %86 : vector<16x128xf32>
    %c48 = arith.constant 48 : index
    %c0_29 = arith.constant 0 : index
    %88 = vector.load %arg12[%c48, %c0_29] : memref<64x384xf32, #tpu.memory_space<vmem>>, vector<16x384xf32>
    %89 = arith.truncf %87 : vector<16x128xf32> to vector<16x128xbf16>
    %cst_30 = arith.constant dense<0.000000e+00> : vector<16x384xf32>
    %90 = tpu.matmul %89, %4, %cst_30 {dimension_numbers = #tpu.dot_dimension_numbers<[1], [0], [0], [1], [0, 0, 1, 1], [], []>} : vector<16x128xbf16>, vector<128x384xbf16>, vector<16x384xf32> -> vector<16x384xf32>
    %91 = vector.extract_strided_slice %88 {offsets = [0, 0], sizes = [16, 256], strides = [1, 1]} : vector<16x384xf32> to vector<16x256xf32>
    %92 = vector.extract_strided_slice %90 {offsets = [0, 0], sizes = [16, 256], strides = [1, 1]} : vector<16x384xf32> to vector<16x256xf32>
    %93 = arith.addf %91, %92 : vector<16x256xf32>
    %cst_31 = arith.constant 0.000000e+00 : f32
    %94 = vector.broadcast %cst_31 : f32 to vector<16x256xf32>
    %95 = arith.subf %94, %93 : vector<16x256xf32>
    %96 = math.exp %95 : vector<16x256xf32>
    %cst_32 = arith.constant 1.000000e+00 : f32
    %97 = vector.broadcast %cst_32 : f32 to vector<16x256xf32>
    %98 = arith.addf %97, %96 : vector<16x256xf32>
    %99 = tpu.reciprocal %98 {approx = true} : vector<16x256xf32> -> vector<16x256xf32>
    %100 = vector.extract_strided_slice %99 {offsets = [0, 0], sizes = [16, 128], strides = [1, 1]} : vector<16x256xf32> to vector<16x128xf32>
    %101 = vector.extract_strided_slice %99 {offsets = [0, 128], sizes = [16, 128], strides = [1, 1]} : vector<16x256xf32> to vector<16x128xf32>
    %102 = vector.extract_strided_slice %88 {offsets = [0, 256], sizes = [16, 128], strides = [1, 1]} : vector<16x384xf32> to vector<16x128xf32>
    %103 = vector.extract_strided_slice %90 {offsets = [0, 256], sizes = [16, 128], strides = [1, 1]} : vector<16x384xf32> to vector<16x128xf32>
    %104 = arith.addf %103, %8 : vector<16x128xf32>
    %105 = arith.mulf %100, %104 : vector<16x128xf32>
    %106 = arith.addf %102, %105 : vector<16x128xf32>
    %107 = math.tanh %106 : vector<16x128xf32>
    %108 = arith.subf %87, %107 : vector<16x128xf32>
    %109 = arith.mulf %101, %108 : vector<16x128xf32>
    %110 = arith.addf %107, %109 : vector<16x128xf32>
    %c1_i32_33 = arith.constant 1 : i32
    %111 = arith.cmpi sge, %arg1, %c1_i32_33 : i32
    %c4_i32 = arith.constant 4 : i32
    %112 = arith.muli %11, %c4_i32 : i32
    %c8_i32 = arith.constant 8 : i32
    %113 = arith.cmpi slt, %112, %c8_i32 : i32
    %114 = arith.andi %111, %113 : i1
    %115 = arith.select %114, %110, %9 : vector<16x128xf32>
    %c4 = arith.constant 4 : index
    %c0_34 = arith.constant 0 : index
    %c0_35 = arith.constant 0 : index
    %116 = vector.load %arg2[%c4, %c0_34, %c0_35] : memref<8x16x16xbf16, #tpu.memory_space<vmem>>, vector<4x16x16xbf16>
    %117 = vector.shape_cast %116 : vector<4x16x16xbf16> to vector<64x16xbf16>
    %cst_36 = arith.constant dense<0.000000e+00> : vector<64x384xf32>
    %118 = tpu.matmul %117, %3, %cst_36 {dimension_numbers = #tpu.dot_dimension_numbers<[1], [0], [0], [1], [0, 0, 1, 1], [], []>} : vector<64x16xbf16>, vector<16x384xbf16>, vector<64x384xf32> -> vector<64x384xf32>
    %119 = vector.broadcast %5 : vector<1x384xf32> to vector<64x384xf32>
    %120 = arith.addf %118, %119 : vector<64x384xf32>
    %c0_37 = arith.constant 0 : index
    %c0_38 = arith.constant 0 : index
    %121 = vector.load %arg12[%c0_37, %c0_38] : memref<64x384xf32, #tpu.memory_space<vmem>>, vector<64x384xf32>
    tpu.vector_store %arg12[%c0_37, %c0_38], %120 {strides = array<i32>} : memref<64x384xf32, #tpu.memory_space<vmem>>, vector<64x384xf32>,
    %c0_39 = arith.constant 0 : index
    %c0_40 = arith.constant 0 : index
    %122 = vector.load %arg11[%c0_39, %c0_40] : memref<64x384xf32, #tpu.memory_space<vmem>>, vector<16x384xf32>
    %123 = arith.truncf %115 : vector<16x128xf32> to vector<16x128xbf16>
    %cst_41 = arith.constant dense<0.000000e+00> : vector<16x384xf32>
    %124 = tpu.matmul %123, %4, %cst_41 {dimension_numbers = #tpu.dot_dimension_numbers<[1], [0], [0], [1], [0, 0, 1, 1], [], []>} : vector<16x128xbf16>, vector<128x384xbf16>, vector<16x384xf32> -> vector<16x384xf32>
    %125 = vector.extract_strided_slice %122 {offsets = [0, 0], sizes = [16, 256], strides = [1, 1]} : vector<16x384xf32> to vector<16x256xf32>
    %126 = vector.extract_strided_slice %124 {offsets = [0, 0], sizes = [16, 256], strides = [1, 1]} : vector<16x384xf32> to vector<16x256xf32>
    %127 = arith.addf %125, %126 : vector<16x256xf32>
    %cst_42 = arith.constant 0.000000e+00 : f32
    %128 = vector.broadcast %cst_42 : f32 to vector<16x256xf32>
    %129 = arith.subf %128, %127 : vector<16x256xf32>
    %130 = math.exp %129 : vector<16x256xf32>
    %cst_43 = arith.constant 1.000000e+00 : f32
    %131 = vector.broadcast %cst_43 : f32 to vector<16x256xf32>
    %132 = arith.addf %131, %130 : vector<16x256xf32>
    %133 = tpu.reciprocal %132 {approx = true} : vector<16x256xf32> -> vector<16x256xf32>
    %134 = vector.extract_strided_slice %133 {offsets = [0, 0], sizes = [16, 128], strides = [1, 1]} : vector<16x256xf32> to vector<16x128xf32>
    %135 = vector.extract_strided_slice %133 {offsets = [0, 128], sizes = [16, 128], strides = [1, 1]} : vector<16x256xf32> to vector<16x128xf32>
    %136 = vector.extract_strided_slice %122 {offsets = [0, 256], sizes = [16, 128], strides = [1, 1]} : vector<16x384xf32> to vector<16x128xf32>
    %137 = vector.extract_strided_slice %124 {offsets = [0, 256], sizes = [16, 128], strides = [1, 1]} : vector<16x384xf32> to vector<16x128xf32>
    %138 = arith.addf %137, %8 : vector<16x128xf32>
    %139 = arith.mulf %134, %138 : vector<16x128xf32>
    %140 = arith.addf %136, %139 : vector<16x128xf32>
    %141 = math.tanh %140 : vector<16x128xf32>
    %142 = arith.subf %115, %141 : vector<16x128xf32>
    %143 = arith.mulf %135, %142 : vector<16x128xf32>
    %144 = arith.addf %141, %143 : vector<16x128xf32>
    %c16_44 = arith.constant 16 : index
    %c0_45 = arith.constant 0 : index
    %145 = vector.load %arg11[%c16_44, %c0_45] : memref<64x384xf32, #tpu.memory_space<vmem>>, vector<16x384xf32>
    %146 = arith.truncf %144 : vector<16x128xf32> to vector<16x128xbf16>
    %cst_46 = arith.constant dense<0.000000e+00> : vector<16x384xf32>
    %147 = tpu.matmul %146, %4, %cst_46 {dimension_numbers = #tpu.dot_dimension_numbers<[1], [0], [0], [1], [0, 0, 1, 1], [], []>} : vector<16x128xbf16>, vector<128x384xbf16>, vector<16x384xf32> -> vector<16x384xf32>
    %148 = vector.extract_strided_slice %145 {offsets = [0, 0], sizes = [16, 256], strides = [1, 1]} : vector<16x384xf32> to vector<16x256xf32>
    %149 = vector.extract_strided_slice %147 {offsets = [0, 0], sizes = [16, 256], strides = [1, 1]} : vector<16x384xf32> to vector<16x256xf32>
    %150 = arith.addf %148, %149 : vector<16x256xf32>
    %cst_47 = arith.constant 0.000000e+00 : f32
    %151 = vector.broadcast %cst_47 : f32 to vector<16x256xf32>
    %152 = arith.subf %151, %150 : vector<16x256xf32>
    %153 = math.exp %152 : vector<16x256xf32>
    %cst_48 = arith.constant 1.000000e+00 : f32
    %154 = vector.broadcast %cst_48 : f32 to vector<16x256xf32>
    %155 = arith.addf %154, %153 : vector<16x256xf32>
    %156 = tpu.reciprocal %155 {approx = true} : vector<16x256xf32> -> vector<16x256xf32>
    %157 = vector.extract_strided_slice %156 {offsets = [0, 0], sizes = [16, 128], strides = [1, 1]} : vector<16x256xf32> to vector<16x128xf32>
    %158 = vector.extract_strided_slice %156 {offsets = [0, 128], sizes = [16, 128], strides = [1, 1]} : vector<16x256xf32> to vector<16x128xf32>
    %159 = vector.extract_strided_slice %145 {offsets = [0, 256], sizes = [16, 128], strides = [1, 1]} : vector<16x384xf32> to vector<16x128xf32>
    %160 = vector.extract_strided_slice %147 {offsets = [0, 256], sizes = [16, 128], strides = [1, 1]} : vector<16x384xf32> to vector<16x128xf32>
    %161 = arith.addf %160, %8 : vector<16x128xf32>
    %162 = arith.mulf %157, %161 : vector<16x128xf32>
    %163 = arith.addf %159, %162 : vector<16x128xf32>
    %164 = math.tanh %163 : vector<16x128xf32>
    %165 = arith.subf %144, %164 : vector<16x128xf32>
    %166 = arith.mulf %158, %165 : vector<16x128xf32>
    %167 = arith.addf %164, %166 : vector<16x128xf32>
    %c32_49 = arith.constant 32 : index
    %c0_50 = arith.constant 0 : index
    %168 = vector.load %arg11[%c32_49, %c0_50] : memref<64x384xf32, #tpu.memory_space<vmem>>, vector<16x384xf32>
    %169 = arith.truncf %167 : vector<16x128xf32> to vector<16x128xbf16>
    %cst_51 = arith.constant dense<0.000000e+00> : vector<16x384xf32>
    %170 = tpu.matmul %169, %4, %cst_51 {dimension_numbers = #tpu.dot_dimension_numbers<[1], [0], [0], [1], [0, 0, 1, 1], [], []>} : vector<16x128xbf16>, vector<128x384xbf16>, vector<16x384xf32> -> vector<16x384xf32>
    %171 = vector.extract_strided_slice %168 {offsets = [0, 0], sizes = [16, 256], strides = [1, 1]} : vector<16x384xf32> to vector<16x256xf32>
    %172 = vector.extract_strided_slice %170 {offsets = [0, 0], sizes = [16, 256], strides = [1, 1]} : vector<16x384xf32> to vector<16x256xf32>
    %173 = arith.addf %171, %172 : vector<16x256xf32>
    %cst_52 = arith.constant 0.000000e+00 : f32
    %174 = vector.broadcast %cst_52 : f32 to vector<16x256xf32>
    %175 = arith.subf %174, %173 : vector<16x256xf32>
    %176 = math.exp %175 : vector<16x256xf32>
    %cst_53 = arith.constant 1.000000e+00 : f32
    %177 = vector.broadcast %cst_53 : f32 to vector<16x256xf32>
    %178 = arith.addf %177, %176 : vector<16x256xf32>
    %179 = tpu.reciprocal %178 {approx = true} : vector<16x256xf32> -> vector<16x256xf32>
    %180 = vector.extract_strided_slice %179 {offsets = [0, 0], sizes = [16, 128], strides = [1, 1]} : vector<16x256xf32> to vector<16x128xf32>
    %181 = vector.extract_strided_slice %179 {offsets = [0, 128], sizes = [16, 128], strides = [1, 1]} : vector<16x256xf32> to vector<16x128xf32>
    %182 = vector.extract_strided_slice %168 {offsets = [0, 256], sizes = [16, 128], strides = [1, 1]} : vector<16x384xf32> to vector<16x128xf32>
    %183 = vector.extract_strided_slice %170 {offsets = [0, 256], sizes = [16, 128], strides = [1, 1]} : vector<16x384xf32> to vector<16x128xf32>
    %184 = arith.addf %183, %8 : vector<16x128xf32>
    %185 = arith.mulf %180, %184 : vector<16x128xf32>
    %186 = arith.addf %182, %185 : vector<16x128xf32>
    %187 = math.tanh %186 : vector<16x128xf32>
    %188 = arith.subf %167, %187 : vector<16x128xf32>
    %189 = arith.mulf %181, %188 : vector<16x128xf32>
    %190 = arith.addf %187, %189 : vector<16x128xf32>
    %c48_54 = arith.constant 48 : index
    %c0_55 = arith.constant 0 : index
    %191 = vector.load %arg11[%c48_54, %c0_55] : memref<64x384xf32, #tpu.memory_space<vmem>>, vector<16x384xf32>
    %192 = arith.truncf %190 : vector<16x128xf32> to vector<16x128xbf16>
    %cst_56 = arith.constant dense<0.000000e+00> : vector<16x384xf32>
    %193 = tpu.matmul %192, %4, %cst_56 {dimension_numbers = #tpu.dot_dimension_numbers<[1], [0], [0], [1], [0, 0, 1, 1], [], []>} : vector<16x128xbf16>, vector<128x384xbf16>, vector<16x384xf32> -> vector<16x384xf32>
    %194 = vector.extract_strided_slice %191 {offsets = [0, 0], sizes = [16, 256], strides = [1, 1]} : vector<16x384xf32> to vector<16x256xf32>
    %195 = vector.extract_strided_slice %193 {offsets = [0, 0], sizes = [16, 256], strides = [1, 1]} : vector<16x384xf32> to vector<16x256xf32>
    %196 = arith.addf %194, %195 : vector<16x256xf32>
    %cst_57 = arith.constant 0.000000e+00 : f32
    %197 = vector.broadcast %cst_57 : f32 to vector<16x256xf32>
    %198 = arith.subf %197, %196 : vector<16x256xf32>
    %199 = math.exp %198 : vector<16x256xf32>
    %cst_58 = arith.constant 1.000000e+00 : f32
    %200 = vector.broadcast %cst_58 : f32 to vector<16x256xf32>
    %201 = arith.addf %200, %199 : vector<16x256xf32>
    %202 = tpu.reciprocal %201 {approx = true} : vector<16x256xf32> -> vector<16x256xf32>
    %203 = vector.extract_strided_slice %202 {offsets = [0, 0], sizes = [16, 128], strides = [1, 1]} : vector<16x256xf32> to vector<16x128xf32>
    %204 = vector.extract_strided_slice %202 {offsets = [0, 128], sizes = [16, 128], strides = [1, 1]} : vector<16x256xf32> to vector<16x128xf32>
    %205 = vector.extract_strided_slice %191 {offsets = [0, 256], sizes = [16, 128], strides = [1, 1]} : vector<16x384xf32> to vector<16x128xf32>
    %206 = vector.extract_strided_slice %193 {offsets = [0, 256], sizes = [16, 128], strides = [1, 1]} : vector<16x384xf32> to vector<16x128xf32>
    %207 = arith.addf %206, %8 : vector<16x128xf32>
    %208 = arith.mulf %203, %207 : vector<16x128xf32>
    %209 = arith.addf %205, %208 : vector<16x128xf32>
    %210 = math.tanh %209 : vector<16x128xf32>
    %211 = arith.subf %190, %210 : vector<16x128xf32>
    %212 = arith.mulf %204, %211 : vector<16x128xf32>
    %213 = arith.addf %210, %212 : vector<16x128xf32>
    %c4_i32_59 = arith.constant 4 : i32
    %214 = arith.muli %12, %c4_i32_59 : i32
    %c8_i32_60 = arith.constant 8 : i32
    %215 = arith.cmpi slt, %214, %c8_i32_60 : i32
    %216 = arith.select %215, %213, %115 : vector<16x128xf32>
    %c0_61 = arith.constant 0 : index
    %c0_62 = arith.constant 0 : index
    %217 = vector.load %arg10[%c0_61, %c0_62] : memref<16x128xf32, #tpu.memory_space<vmem>>, vector<16x128xf32>
    tpu.vector_store %arg10[%c0_61, %c0_62], %216 {strides = array<i32>} : memref<16x128xf32, #tpu.memory_space<vmem>>, vector<16x128xf32>,
    %c1_i32_63 = arith.constant 1 : i32
    %218 = arith.cmpi eq, %arg1, %c1_i32_63 : i32
    %219 = arith.extui %218 : i1 to i32
    %c0_i32_64 = arith.constant 0 : i32
    %220 = arith.cmpi ne, %219, %c0_i32_64 : i32
    scf.if %220 {
      %221 = arith.truncf %216 : vector<16x128xf32> to vector<16x128xbf16>
      %c0_65 = arith.constant 0 : index
      %c0_66 = arith.constant 0 : index
      %222 = vector.load %arg7[%c0_65, %c0_66] : memref<128x128xbf16, #tpu.memory_space<vmem>>, vector<128x128xbf16>
      %cst_67 = arith.constant dense<0.000000e+00> : vector<16x128xf32>
      %223 = tpu.matmul %221, %222, %cst_67 {dimension_numbers = #tpu.dot_dimension_numbers<[1], [0], [0], [1], [0, 0, 1, 1], [], []>} : vector<16x128xbf16>, vector<128x128xbf16>, vector<16x128xf32> -> vector<16x128xf32>
      %c0_68 = arith.constant 0 : index
      %c0_69 = arith.constant 0 : index
      %224 = vector.load %arg8[%c0_68, %c0_69] : memref<1x128xf32, #tpu.memory_space<vmem>>, vector<1x128xf32>
      %225 = vector.broadcast %224 : vector<1x128xf32> to vector<16x128xf32>
      %226 = arith.addf %223, %225 : vector<16x128xf32>
      %c0_70 = arith.constant 0 : index
      %c0_71 = arith.constant 0 : index
      %227 = vector.load %arg9[%c0_70, %c0_71] : memref<16x128xf32, #tpu.memory_space<vmem>>, vector<16x128xf32>
      tpu.vector_store %arg9[%c0_70, %c0_71], %226 {strides = array<i32>} : memref<16x128xf32, #tpu.memory_space<vmem>>, vector<16x128xf32>,
    } else {
    }
    return
  }
  func.func @transform_0(%arg0: i32, %arg1: i32) -> (i32, i32, i32) {
    %c0_i32 = arith.constant 0 : i32
    %0 = arith.minsi %arg1, %c0_i32 : i32
    %c0_i32_0 = arith.constant 0 : i32
    %c0_i32_1 = arith.constant 0 : i32
    return %0, %arg0, %c0_i32_0 : i32, i32, i32
  }
  func.func @transform_1(%arg0: i32, %arg1: i32) -> (i32, i32) {
    %c0_i32 = arith.constant 0 : i32
    %c0_i32_0 = arith.constant 0 : i32
    %c0_i32_1 = arith.constant 0 : i32
    return %c0_i32, %c0_i32_0 : i32, i32
  }
  func.func @transform_2(%arg0: i32, %arg1: i32) -> (i32, i32) {
    %c0_i32 = arith.constant 0 : i32
    %c0_i32_0 = arith.constant 0 : i32
    %c0_i32_1 = arith.constant 0 : i32
    return %c0_i32, %c0_i32_0 : i32, i32
  }
  func.func @transform_3(%arg0: i32, %arg1: i32) -> (i32, i32) {
    %c0_i32 = arith.constant 0 : i32
    %c0_i32_0 = arith.constant 0 : i32
    %c0_i32_1 = arith.constant 0 : i32
    return %c0_i32, %c0_i32_0 : i32, i32
  }
  func.func @transform_4(%arg0: i32, %arg1: i32) -> (i32, i32) {
    %c0_i32 = arith.constant 0 : i32
    %c0_i32_0 = arith.constant 0 : i32
    %c0_i32_1 = arith.constant 0 : i32
    return %c0_i32, %c0_i32_0 : i32, i32
  }
  func.func @transform_5(%arg0: i32, %arg1: i32) -> (i32, i32) {
    %c0_i32 = arith.constant 0 : i32
    %c0_i32_0 = arith.constant 0 : i32
    %c0_i32_1 = arith.constant 0 : i32
    return %c0_i32, %c0_i32_0 : i32, i32
  }
  func.func @transform_6(%arg0: i32, %arg1: i32) -> (i32, i32) {
    %c0_i32 = arith.constant 0 : i32
    %c0_i32_0 = arith.constant 0 : i32
    %c0_i32_1 = arith.constant 0 : i32
    return %c0_i32, %c0_i32_0 : i32, i32
  }
  func.func @transform_7(%arg0: i32, %arg1: i32) -> (i32, i32) {
    %c0_i32 = arith.constant 0 : i32
    %c0_i32_0 = arith.constant 0 : i32
    return %arg0, %c0_i32 : i32, i32
  }
}

</mosaic_0001>

<llo_original>
// kernel: tpu_custom_call.1
$region0: #{tpu_custom_call.1}
  #allocation0 [shape = 'u32[]', space=smem, size = 0x4, offset = 0x4, fixed_abs, tag = 'smem constant byte address 0x4 - core index']
  #allocation1 [shape = 'u32[144,128]{1,0:T(1,128)}', space=vmem, size = 0x12000, scoped, tag = 'internal scratch']
  #allocation2 [shape = 'f32[16,128]{1,0:T(8,128)}', space=vmem, size = 0x2000, scoped, tag = 'scratch operand']
  #allocation3 [shape = 'f32[64,384]{1,0:T(8,128)}', space=vmem, size = 0x18000, scoped, tag = 'scratch operand']
  #allocation4 [shape = 'f32[64,384]{1,0:T(8,128)}', space=vmem, size = 0x18000, scoped, tag = 'scratch operand']
  %s0 = inlined_call_operand.hbm [shape: bf16[8,16,16], index: 0, kind: input, shape index: {}]
  %s1 = inlined_call_operand.hbm [shape: bf16[16,384], index: 1, kind: input, shape index: {}]
  %s2 = inlined_call_operand.hbm [shape: bf16[128,384], index: 2, kind: input, shape index: {}]
  %s3 = inlined_call_operand.vmem [shape: f32[1,384], index: 3, kind: input, shape index: {}]
  %s4 = inlined_call_operand.vmem [shape: f32[1,128], index: 4, kind: input, shape index: {}]
  %s5 = inlined_call_operand.hbm [shape: bf16[128,128], index: 5, kind: input, shape index: {}]
  %s6 = inlined_call_operand.vmem [shape: f32[1,128], index: 6, kind: input, shape index: {}]
  %s7 = inlined_call_operand.hbm [shape: f32[16,128], index: 7, kind: output, shape index: {}]
  %s8 = sld [smem:[#allocation0]]
  $region85: #{tpu_custom_call.1} parent=0
    _
  %s10 = ssub.s32 1, %s8
  %s11 = scalar_select 0, %s10, %s8
  $region1: #{tpu_custom_call.1} parent=0
    #allocation5 [shape = 'u8[65536]{0}', space=vmem, size = 0x10000, scoped, tag = 'input window, operand 0']
    #allocation6 [shape = 's32[2]{0}', space=sflag, size = 0x8, scoped, tag = 'scoped memory for tpu_custom_call.1']
    #allocation7 [shape = 's32[2]{0}', space=sflag, size = 0x8, scoped, tag = 'scoped memory for tpu_custom_call.1']
    #allocation8 [shape = 'u8[12288]{0}', space=vmem, size = 0x3000, scoped, tag = 'input window, operand 1, single buffered']
    #allocation9 [shape = 's32[1]{0}', space=sflag, size = 0x4, scoped, tag = 'scoped memory for tpu_custom_call.1']
    #allocation10 [shape = 'u8[98304]{0}', space=vmem, size = 0x18000, scoped, tag = 'input window, operand 2, single buffered']
    #allocation11 [shape = 'u8[32768]{0}', space=vmem, size = 0x8000, scoped, tag = 'input window, operand 5, single buffered']
    #allocation12 [shape = 's32[1]{0}', space=sflag, size = 0x4, scoped, tag = 'scoped memory for tpu_custom_call.1']
    #allocation13 [shape = 'u8[8192]{0}', space=vmem, size = 0x2000, scoped, tag = 'output window, operand 0, single buffered']
    %12 = vsyncpa [#allocation6], 0
    %s13 = scalar_lea.sflag [#allocation6], 1
    %14 = vsyncpa %s13, 0
    %15 = vsyncpa [#allocation9], 0
    %16 = vsyncpa [#allocation12], 0
    %17 = vsyncpa [#allocation7], 0
    loop: start=0, step=1, limit=4
    $region2: #{tpu_custom_call.1} parent=1 // loop_pre_header
      _
    $region3: #{tpu_custom_call.1} parent=1 // loop_header
      %s19 = sphi 0, %s23
      %p20 = scmp.ge.s32.totalorder %s19, 4
      %s26 = sphi 0, %s38
      %s27 = sphi 0, %s34
      %s28 = sphi 0, %s26
      %s29 = sphi 0, %s27
      %s30 = sphi 0, %s28
      %s31 = sphi 0, %s29
      %s47 = sphi 0, %s49
      %s50 = sphi 0, %s47
      %s51 = sphi 0, %s50
      %s67 = sphi 0, %s51
      %s71 = sphi 0, %s71
      %s73 = sphi 0, %s71
      %s74 = sphi 0, %s73
      %s88 = sphi 0, %s74
      %s92 = sphi 0, %s92
      %s94 = sphi 0, %s92
      %s95 = sphi 0, %s94
      %s109 = sphi 0, %s95
      %s113 = sphi 0, %s113
      %s115 = sphi 0, %s113
      %s116 = sphi 0, %s115
      %s130 = sphi 0, %s116
      %s134 = sphi 0, %s134
      %s136 = sphi 0, %s134
      %s137 = sphi 0, %s136
      %s151 = sphi 0, %s137
      %s155 = sphi 0, %s155
      %s157 = sphi 0, %s155
      %s158 = sphi 0, %s157
      %s172 = sphi 0, %s158
      %s176 = sphi 0, %s176
      %s178 = sphi 0, %s176
      %s179 = sphi 0, %s178
      %s193 = sphi 0, %s179
      %s199 = sphi 0, %s201
      %s202 = sphi 0, %s199
      %s203 = sphi 0, %s202
      %s219 = sphi 0, %s203
    $region4: #{tpu_custom_call.1} parent=1 // loop_header_branch
      %22 = sbr.rel (%p20) target = $region8
    $region5: #{tpu_custom_call.1} parent=1 // loop_body
      %s24 = ssub.s32 %s19, 1
      %s25 = ssub.s32 %s19, 2
      %s32 = sadd.s32 1, %s27
      %p33 = scmp.ge.s32.totalorder %s32, 2
      %s34 = scalar_select %p33, 0, %s32
      %s35 = sadd.s32 1, %s26
      %s36 = scalar_select %p33, %s35, %s26
      %p37 = scmp.ge.s32.totalorder %s36, 1
      %s38 = scalar_select %p37, 0, %s36
      %p39 = scmp.lt.s32.totalorder %s27, 0
      %s40 = scalar_select %p39, %s27, 0
      %p41 = scmp.lt.s32.totalorder %s34, 0
      %s42 = scalar_select %p41, %s34, 0
      %s43 = ssub.s32 %s40, %s42
      %s44 = ssub.s32 %s26, %s38
      %s45 = sor.u32 %s43, %s44
      %p46 = scmp.eq.s32.totalorder %s45, 0
      %s48 = sadd.s32 %s47, 1
      %s49 = scalar_select %p46, %s47, %s48
      %p52 = pneg %p46
      %p53 = scmp.eq.s32.totalorder %s19, 1
      %p54 = por %p52, %p53
      %p55 = scmp.ne.s32.totalorder %s47, %s50
      %p56 = scmp.eq.s32.totalorder %s19, 0
      %p57 = por %p55, %p56
      %p58 = scmp.ne.s32.totalorder %s47, %s50
      %p59 = scmp.eq.s32.totalorder %s24, 1
      %p60 = por %p58, %p59
      %p61 = scmp.ne.s32.totalorder %s50, %s51
      %p62 = scmp.eq.s32.totalorder %s24, 0
      %p63 = por %p61, %p62
      %p64 = scmp.ne.s32.totalorder %s50, %s51
      %p65 = scmp.eq.s32.totalorder %s25, 1
      %p66 = por %p64, %p65
      %p68 = scmp.ne.s32.totalorder %s51, %s67
      %p69 = scmp.eq.s32.totalorder %s25, 0
      %p70 = por %p68, %p69
      %s72 = sadd.s32 %s71, 1
      %p75 = scmp.eq.s32.totalorder %s19, 1
      %p76 = scmp.ne.s32.totalorder %s71, %s73
      %p77 = scmp.eq.s32.totalorder %s19, 0
      %p78 = por %p76, %p77
      %p79 = scmp.ne.s32.totalorder %s71, %s73
      %p80 = scmp.eq.s32.totalorder %s24, 1
      %p81 = por %p79, %p80
      %p82 = scmp.ne.s32.totalorder %s73, %s74
      %p83 = scmp.eq.s32.totalorder %s24, 0
      %p84 = por %p82, %p83
      %p85 = scmp.ne.s32.totalorder %s73, %s74
      %p86 = scmp.eq.s32.totalorder %s25, 1
      %p87 = por %p85, %p86
      %p89 = scmp.ne.s32.totalorder %s74, %s88
      %p90 = scmp.eq.s32.totalorder %s25, 0
      %p91 = por %p89, %p90
      %s93 = sadd.s32 %s92, 1
      %p96 = scmp.eq.s32.totalorder %s19, 1
      %p97 = scmp.ne.s32.totalorder %s92, %s94
      %p98 = scmp.eq.s32.totalorder %s19, 0
      %p99 = por %p97, %p98
      %p100 = scmp.ne.s32.totalorder %s92, %s94
      %p101 = scmp.eq.s32.totalorder %s24, 1
      %p102 = por %p100, %p101
      %p103 = scmp.ne.s32.totalorder %s94, %s95
      %p104 = scmp.eq.s32.totalorder %s24, 0
      %p105 = por %p103, %p104
      %p106 = scmp.ne.s32.totalorder %s94, %s95
      %p107 = scmp.eq.s32.totalorder %s25, 1
      %p108 = por %p106, %p107
      %p110 = scmp.ne.s32.totalorder %s95, %s109
      %p111 = scmp.eq.s32.totalorder %s25, 0
      %p112 = por %p110, %p111
      %s114 = sadd.s32 %s113, 1
      %p117 = scmp.eq.s32.totalorder %s19, 1
      %p118 = scmp.ne.s32.totalorder %s113, %s115
      %p119 = scmp.eq.s32.totalorder %s19, 0
      %p120 = por %p118, %p119
      %p121 = scmp.ne.s32.totalorder %s113, %s115
      %p122 = scmp.eq.s32.totalorder %s24, 1
      %p123 = por %p121, %p122
      %p124 = scmp.ne.s32.totalorder %s115, %s116
      %p125 = scmp.eq.s32.totalorder %s24, 0
      %p126 = por %p124, %p125
      %p127 = scmp.ne.s32.totalorder %s115, %s116
      %p128 = scmp.eq.s32.totalorder %s25, 1
      %p129 = por %p127, %p128
      %p131 = scmp.ne.s32.totalorder %s116, %s130
      %p132 = scmp.eq.s32.totalorder %s25, 0
      %p133 = por %p131, %p132
      %s135 = sadd.s32 %s134, 1
      %p138 = scmp.eq.s32.totalorder %s19, 1
      %p139 = scmp.ne.s32.totalorder %s134, %s136
      %p140 = scmp.eq.s32.totalorder %s19, 0
      %p141 = por %p139, %p140
      %p142 = scmp.ne.s32.totalorder %s134, %s136
      %p143 = scmp.eq.s32.totalorder %s24, 1
      %p144 = por %p142, %p143
      %p145 = scmp.ne.s32.totalorder %s136, %s137
      %p146 = scmp.eq.s32.totalorder %s24, 0
      %p147 = por %p145, %p146
      %p148 = scmp.ne.s32.totalorder %s136, %s137
      %p149 = scmp.eq.s32.totalorder %s25, 1
      %p150 = por %p148, %p149
      %p152 = scmp.ne.s32.totalorder %s137, %s151
      %p153 = scmp.eq.s32.totalorder %s25, 0
      %p154 = por %p152, %p153
      %s156 = sadd.s32 %s155, 1
      %p159 = scmp.eq.s32.totalorder %s19, 1
      %p160 = scmp.ne.s32.totalorder %s155, %s157
      %p161 = scmp.eq.s32.totalorder %s19, 0
      %p162 = por %p160, %p161
      %p163 = scmp.ne.s32.totalorder %s155, %s157
      %p164 = scmp.eq.s32.totalorder %s24, 1
      %p165 = por %p163, %p164
      %p166 = scmp.ne.s32.totalorder %s157, %s158
      %p167 = scmp.eq.s32.totalorder %s24, 0
      %p168 = por %p166, %p167
      %p169 = scmp.ne.s32.totalorder %s157, %s158
      %p170 = scmp.eq.s32.totalorder %s25, 1
      %p171 = por %p169, %p170
      %p173 = scmp.ne.s32.totalorder %s158, %s172
      %p174 = scmp.eq.s32.totalorder %s25, 0
      %p175 = por %p173, %p174
      %s177 = sadd.s32 %s176, 1
      %p180 = scmp.eq.s32.totalorder %s19, 1
      %p181 = scmp.ne.s32.totalorder %s176, %s178
      %p182 = scmp.eq.s32.totalorder %s19, 0
      %p183 = por %p181, %p182
      %p184 = scmp.ne.s32.totalorder %s176, %s178
      %p185 = scmp.eq.s32.totalorder %s24, 1
      %p186 = por %p184, %p185
      %p187 = scmp.ne.s32.totalorder %s178, %s179
      %p188 = scmp.eq.s32.totalorder %s24, 0
      %p189 = por %p187, %p188
      %p190 = scmp.ne.s32.totalorder %s178, %s179
      %p191 = scmp.eq.s32.totalorder %s25, 1
      %p192 = por %p190, %p191
      %p194 = scmp.ne.s32.totalorder %s179, %s193
      %p195 = scmp.eq.s32.totalorder %s25, 0
      %p196 = por %p194, %p195
      %s197 = ssub.s32 %s26, %s38
      %p198 = scmp.eq.s32.totalorder %s197, 0
      %s200 = sadd.s32 %s199, 1
      %s201 = scalar_select %p198, %s199, %s200
      %p204 = pneg %p198
      %p205 = scmp.eq.s32.totalorder %s19, 1
      %p206 = por %p204, %p205
      %p207 = scmp.ne.s32.totalorder %s199, %s202
      %p208 = scmp.eq.s32.totalorder %s19, 0
      %p209 = por %p207, %p208
      %p210 = scmp.ne.s32.totalorder %s199, %s202
      %p211 = scmp.eq.s32.totalorder %s24, 1
      %p212 = por %p210, %p211
      %p213 = scmp.ne.s32.totalorder %s202, %s203
      %p214 = scmp.eq.s32.totalorder %s24, 0
      %p215 = por %p213, %p214
      %p216 = scmp.ne.s32.totalorder %s202, %s203
      %p217 = scmp.eq.s32.totalorder %s25, 1
      %p218 = por %p216, %p217
      %p220 = scmp.ne.s32.totalorder %s203, %s219
      %p221 = scmp.eq.s32.totalorder %s25, 0
      %p222 = por %p220, %p221
      %p223 = scmp.le.s32.totalorder 1, %s19
      %p224 = scmp.lt.s32.totalorder %s19, 3
      %p225 = pnand %p223, %p224
      %p226 = pneg %p225
      // Predicated region
      $region9: #{tpu_custom_call.1} parent=5 // pred_check
        _
      $region10: #{tpu_custom_call.1} parent=5 // pred_check_branch
        %228 = sbr.rel (%p225) target = $region12
      $region11: #{tpu_custom_call.1} parent=5 // pred_region
        %s229 = ssub.s32 %s19, 1
        // Predicated region
        $region13: #{tpu_custom_call.1} parent=11 // pred_check
          %p230 = pneg %p84
        $region14: #{tpu_custom_call.1} parent=11 // pred_check_branch
          %232 = sbr.rel (%p230) target = $region16
        $region15: #{tpu_custom_call.1} parent=11 // pred_region
          %s234 = ssub.s32 384, 384
          %235 = vsyncadd [#allocation9], %s234
          %s236 = sshll.u32 [#allocation8], 4
          %s237 = int_to_ptr.vmem [resolvable:$true] %s236
          %242 = dma.hbm_to_vmem [thread:$0]  %s1, 384, %s237, [#allocation9], 192, 192, 12
        $region16: #{tpu_custom_call.1} parent=11 // pred_fallthru
          _
        // Predicated region
        $region17: #{tpu_custom_call.1} parent=11 // pred_check
          %p243 = pneg %p105
        $region18: #{tpu_custom_call.1} parent=11 // pred_check_branch
          %245 = sbr.rel (%p243) target = $region20
        $region19: #{tpu_custom_call.1} parent=11 // pred_region
          %s247 = ssub.s32 3072, 3072
          %248 = vsyncadd [#allocation9], %s247
          %s249 = sshll.u32 [#allocation10], 4
          %s250 = int_to_ptr.vmem [resolvable:$true] %s249
          %255 = dma.hbm_to_vmem [thread:$0]  %s2, 3072, %s250, [#allocation9], 192, 192, 12
        $region20: #{tpu_custom_call.1} parent=11 // pred_fallthru
          _
        // Predicated region
        $region21: #{tpu_custom_call.1} parent=11 // pred_check
          %p256 = pneg %p126
        $region22: #{tpu_custom_call.1} parent=11 // pred_check_branch
          %258 = sbr.rel (%p256) target = $region24
        $region23: #{tpu_custom_call.1} parent=11 // pred_region
          _
        $region24: #{tpu_custom_call.1} parent=11 // pred_fallthru
          _
        // Predicated region
        $region25: #{tpu_custom_call.1} parent=11 // pred_check
          %p259 = pneg %p147
        $region26: #{tpu_custom_call.1} parent=11 // pred_check_branch
          %261 = sbr.rel (%p259) target = $region28
        $region27: #{tpu_custom_call.1} parent=11 // pred_region
          _
        $region28: #{tpu_custom_call.1} parent=11 // pred_fallthru
          _
        // Predicated region
        $region29: #{tpu_custom_call.1} parent=11 // pred_check
          %p262 = pneg %p168
        $region30: #{tpu_custom_call.1} parent=11 // pred_check_branch
          %264 = sbr.rel (%p262) target = $region32
        $region31: #{tpu_custom_call.1} parent=11 // pred_region
          %s266 = ssub.s32 1024, 1024
          %267 = vsyncadd [#allocation12], %s266
          %s268 = sshll.u32 [#allocation11], 4
          %s269 = int_to_ptr.vmem [resolvable:$true] %s268
          %274 = dma.hbm_to_vmem [thread:$0]  %s5, 1024, %s269, [#allocation12], 64, 64, 4
        $region32: #{tpu_custom_call.1} parent=11 // pred_fallthru
          _
        // Predicated region
        $region33: #{tpu_custom_call.1} parent=11 // pred_check
          %p275 = pneg %p189
        $region34: #{tpu_custom_call.1} parent=11 // pred_check_branch
          %277 = sbr.rel (%p275) target = $region36
        $region35: #{tpu_custom_call.1} parent=11 // pred_region
          _
        $region36: #{tpu_custom_call.1} parent=11 // pred_fallthru
          _
      $region12: #{tpu_custom_call.1} parent=5 // pred_fallthru
        _
      %p278 = scmp.lt.s32.totalorder %s19, 2
      // Predicated region
      $region37: #{tpu_custom_call.1} parent=5 // pred_check
        %p279 = pneg %p278
      $region38: #{tpu_custom_call.1} parent=5 // pred_check_branch
        %281 = sbr.rel (%p279) target = $region40
      $region39: #{tpu_custom_call.1} parent=5 // pred_region
        // Predicated region
        $region41: #{tpu_custom_call.1} parent=39 // pred_check
          %p282 = pneg %p57
        $region42: #{tpu_custom_call.1} parent=39 // pred_check_branch
          %284 = sbr.rel (%p282) target = $region44
        $region43: #{tpu_custom_call.1} parent=39 // pred_region
          %s285 = sand.u32 %s47, 1
          %s286 = scalar_lea.sflag [#allocation6], %s285
          %s287 = sand.u32 %s47, 1
          %s288 = smul.addr %s287, 64
          %s289 = scalar_lea.vmem [#allocation5], %s288
          %p290 = scmp.lt.s32.totalorder %s27, 0
          %s291 = scalar_select %p290, %s27, 0
          %s292 = smul.u32 8, %s291
          %s293 = smul.u32 2, %s26
          %s295 = ssub.s32 1024, 1024
          %296 = vsyncadd %s286, %s295
          %s297 = smul.addr %s292, 2
          %s298 = sadd.s32 %s293, %s297
          %s299 = smul.addr %s298, 64
          %s300 = scalar_lea.hbm %s0, %s299
          %s301 = sshll.u32 %s289, 4
          %s302 = int_to_ptr.vmem [resolvable:$true] %s301
          %307 = dma.hbm_to_vmem [thread:$0]  %s300, 1024, %s302, %s286, 64, 64, 4
        $region44: #{tpu_custom_call.1} parent=39 // pred_fallthru
          _
      $region40: #{tpu_custom_call.1} parent=5 // pred_fallthru
        _
      %p308 = scmp.le.s32.totalorder 1, %s19
      %p309 = scmp.lt.s32.totalorder %s19, 3
      %p310 = pnand %p308, %p309
      %p311 = pneg %p310
      // Predicated region
      $region45: #{tpu_custom_call.1} parent=5 // pred_check
        _
      $region46: #{tpu_custom_call.1} parent=5 // pred_check_branch
        %313 = sbr.rel (%p310) target = $region48
      $region47: #{tpu_custom_call.1} parent=5 // pred_region
        %s314 = ssub.s32 %s19, 1
        %s315 = sand.u32 %s50, 1
        %s316 = scalar_lea.sflag [#allocation6], %s315
        %s317 = sand.u32 %s50, 1
        %s318 = smul.addr %s317, 64
        %s319 = scalar_lea.vmem [#allocation5], %s318
        // Predicated region
        $region49: #{tpu_custom_call.1} parent=47 // pred_check
          %p320 = pneg %p63
        $region50: #{tpu_custom_call.1} parent=47 // pred_check_branch
          %322 = sbr.rel (%p320) target = $region52
        $region51: #{tpu_custom_call.1} parent=47 // pred_region
          %323 = dma.done %s316, 1024
        $region52: #{tpu_custom_call.1} parent=47 // pred_fallthru
          _
        // Predicated region
        $region53: #{tpu_custom_call.1} parent=47 // pred_check
          %p324 = pneg %p84
        $region54: #{tpu_custom_call.1} parent=47 // pred_check_branch
          %326 = sbr.rel (%p324) target = $region56
        $region55: #{tpu_custom_call.1} parent=47 // pred_region
          %327 = dma.done [#allocation9], 384
        $region56: #{tpu_custom_call.1} parent=47 // pred_fallthru
          _
        // Predicated region
        $region57: #{tpu_custom_call.1} parent=47 // pred_check
          %p328 = pneg %p105
        $region58: #{tpu_custom_call.1} parent=47 // pred_check_branch
          %330 = sbr.rel (%p328) target = $region60
        $region59: #{tpu_custom_call.1} parent=47 // pred_region
          %331 = dma.done [#allocation9], 3072
        $region60: #{tpu_custom_call.1} parent=47 // pred_fallthru
          _
        // Predicated region
        $region61: #{tpu_custom_call.1} parent=47 // pred_check
          %p332 = pneg %p168
        $region62: #{tpu_custom_call.1} parent=47 // pred_check_branch
          %334 = sbr.rel (%p332) target = $region64
        $region63: #{tpu_custom_call.1} parent=47 // pred_region
          %335 = dma.done [#allocation12], 1024
        $region64: #{tpu_custom_call.1} parent=47 // pred_fallthru
          _
        %s336 = sand.u32 %s50, 1
        %s337 = scalar_lea.sflag [#allocation6], %s336
        %s338 = sand.u32 %s50, 1
        %s339 = smul.addr %s338, 64
        %s340 = scalar_lea.vmem [#allocation5], %s339
        %p341 = pneg %p63
        %p342 = pneg %p60
        %p343 = pneg %p84
        %p344 = pneg %p81
        %p345 = pneg %p105
        %p346 = pneg %p102
        %p347 = pneg %p126
        %p348 = pneg %p123
        %p349 = pneg %p147
        %p350 = pneg %p144
        %p351 = pneg %p168
        %p352 = pneg %p165
        %p353 = pneg %p189
        %p354 = pneg %p186
        %p355 = pneg %p215
        %p356 = pneg %p212
        %p357 = scmp.lt.s32.totalorder %s29, 0
        %s358 = scalar_select %p357, %s29, 0
        %s359 = smul.u32 8, %s358
        %s360 = smul.u32 2, %s28
        %s361 = smul.u32 2, %s28
        %p363 = scmp.eq.s32.totalorder %s29, 0
        // Predicated region
        $region65: #{tpu_custom_call.1} parent=47 // pred_check
          %p364 = pneg %p363
        $region66: #{tpu_custom_call.1} parent=47 // pred_check_branch
          %366 = sbr.rel (%p364) target = $region68
        $region67: #{tpu_custom_call.1} parent=47 // pred_region
          %367 = vst [vmem:[#allocation2] sm:$0xff] 0.0
          %368 = vst [vmem:[#allocation2 + $0x8] sm:$0xff] 0.0
        $region68: #{tpu_custom_call.1} parent=47 // pred_fallthru
          _
        %v369 = vld [vmem:[#allocation8] sm:$0xff]
        %v370 = vld [vmem:[#allocation8 + $0x8] sm:$0xf]
        %v371 = vld [vmem:[#allocation8 + $0xc] sm:$0xff]
        %v372 = vld [vmem:[#allocation8 + $0x14] sm:$0xf]
        %v373 = vld [vmem:[#allocation10] sm:$0xff]
        %v374 = vld [vmem:[#allocation10 + $0x8] sm:$0xf]
        %v375 = vld [vmem:[#allocation10 + $0xc] sm:$0xff]
        %v376 = vld [vmem:[#allocation10 + $0x14] sm:$0xf]
        %v377 = vld [vmem:[#allocation10 + $0x18] sm:$0xff]
        %v378 = vld [vmem:[#allocation10 + $0x20] sm:$0xf]
        %v379 = vld [vmem:[#allocation10 + $0x24] sm:$0xff]
        %v380 = vld [vmem:[#allocation10 + $0x2c] sm:$0xf]
        %v381 = vld [vmem:[#allocation10 + $0x30] sm:$0xff]
        %v382 = vld [vmem:[#allocation10 + $0x38] sm:$0xf]
        %v383 = vld [vmem:[#allocation10 + $0x3c] sm:$0xff]
        %v384 = vld [vmem:[#allocation10 + $0x44] sm:$0xf]
        %v385 = vld [vmem:[#allocation10 + $0x48] sm:$0xff]
        %v386 = vld [vmem:[#allocation10 + $0x50] sm:$0xf]
        %v387 = vld [vmem:[#allocation10 + $0x54] sm:$0xff]
        %v388 = vld [vmem:[#allocation10 + $0x5c] sm:$0xf]
        %v389 = vld [vmem:[#allocation10 + $0x60] sm:$0xff]
        %v390 = vld [vmem:[#allocation10 + $0x68] sm:$0xf]
        %v391 = vld [vmem:[#allocation10 + $0x6c] sm:$0xff]
        %v392 = vld [vmem:[#allocation10 + $0x74] sm:$0xf]
        %v393 = vld [vmem:[#allocation10 + $0x78] sm:$0xff]
        %v394 = vld [vmem:[#allocation10 + $0x80] sm:$0xf]
        %v395 = vld [vmem:[#allocation10 + $0x84] sm:$0xff]
        %v396 = vld [vmem:[#allocation10 + $0x8c] sm:$0xf]
        %v397 = vld [vmem:[#allocation10 + $0x90] sm:$0xff]
        %v398 = vld [vmem:[#allocation10 + $0x98] sm:$0xf]
        %v399 = vld [vmem:[#allocation10 + $0x9c] sm:$0xff]
        %v400 = vld [vmem:[#allocation10 + $0xa4] sm:$0xf]
        %v401 = vld [vmem:[#allocation10 + $0xa8] sm:$0xff]
        %v402 = vld [vmem:[#allocation10 + $0xb0] sm:$0xf]
        %v403 = vld [vmem:[#allocation10 + $0xb4] sm:$0xff]
        %v404 = vld [vmem:[#allocation10 + $0xbc] sm:$0xf]
        %v405 = vld [vmem:[%s3] sm:$0x7]
        %v406 = vld [vmem:[%s4] sm:$0x1]
        %v408 = vlaneseq
        %v409 = vshrl.u32 %v408, 7
        %v410 = vsub.s32 0, %v409
        %v411 = vrot.slane %v406, %v410
        %v413 = vld [vmem:[#allocation2] sm:$0xff]
        %v414 = vld [vmem:[#allocation2 + $0x8] sm:$0xff]
        %s415 = smul.u32 %s29, 2
        %s416 = ssub.s32 %s415, 1
        %v417 = vld [vmem:[%s319] sm:$0xf]
        %v418 = vld [vmem:[%s319 + $0x4] sm:$0xf]
        %v419 = vld [vmem:[%s319 + $0x8] sm:$0xf]
        %v420 = vld [vmem:[%s319 + $0xc] sm:$0xf]
        %v421 = vld [vmem:[%s319 + $0x10] sm:$0xf]
        %v422 = vld [vmem:[%s319 + $0x14] sm:$0xf]
        %v423 = vld [vmem:[%s319 + $0x18] sm:$0xf]
        %v424 = vld [vmem:[%s319 + $0x1c] sm:$0xf]
        %v426 = vlaneseq
        %v427 = vshrl.u32 %v426, 7
        %v428 = vsub.s32 0, %v427
        %v429 = vrot.slane %v405, %v428
        %v430 = vlaneseq
        %v431 = vshrl.u32 %v430, 7
        %v432 = vsub.s32 1, %v431
        %v433 = vrot.slane %v405, %v432
        %v434 = vlaneseq
        %v435 = vshrl.u32 %v434, 7
        %v436 = vsub.s32 2, %v435
        %v437 = vrot.slane %v405, %v436
        %v449 = vunpack.c.l.b16 %v417
        %v450 = vunpack.c.l.b16 %v418
        %v451 = vunpack.c.l.b16 %v419
        %v452 = vunpack.c.l.b16 %v420
        %v453 = vunpack.c.l.b16 %v421
        %v454 = vunpack.c.l.b16 %v422
        %v455 = vunpack.c.l.b16 %v423
        %v456 = vunpack.c.l.b16 %v424
        %v457 = vpack.c.b16 %v450, %v449
        %v458 = vpack.c.b16 %v452, %v451
        %v459 = vpack.c.b16 %v454, %v453
        %v460 = vpack.c.b16 %v456, %v455
        %v465 = vunpack.c.l.b16 %v369
        %v466 = vunpack.c.h.b16 %v369
        %v467 = vunpack.c.l.b16 %v370
        %v468 = vunpack.c.l.b16 %v371
        %v469 = vunpack.c.h.b16 %v371
        %v470 = vunpack.c.l.b16 %v372
        %v471 = vpack.c.b16 %v468, %v465
        %v472 = vpack.c.b16 %v469, %v466
        %v473 = vpack.c.b16 %v470, %v467
        %vm477 = vcmask 130048
        %v479 = vsel %vm477, %v457, 0
        %v482 = vsel %vm477, %v458, 0
        %v485 = vsel %vm477, %v459, 0
        %v488 = vsel %vm477, %v460, 0
        %490 = vmatprep.subr.bf16.mxu0 0
        %491 = vmatpush1.bf16.msra.mxu0 0
        %492 = vmatprep.subr.bf16.mxu0 0
        %493 = vmatpush1.bf16.msra.mxu0 0
        %494 = vmatprep.subr.bf16.mxu0 0
        %495 = vmatpush1.bf16.msra.mxu0 0
        %496 = vmatprep.subr.bf16.mxu0 0
        %497 = vmatpush1.bf16.msra.mxu0 0
        %498 = vmatprep.subr.bf16.mxu0 0
        %499 = vmatpush1.bf16.msra.mxu0 0
        %500 = vmatprep.subr.bf16.mxu0 0
        %501 = vmatpush1.bf16.msra.mxu0 0
        %502 = vmatprep.subr.bf16.mxu0 0
        %503 = vmatpush1.bf16.msra.mxu0 0
        %504 = vmatprep.subr.bf16.mxu0 %v472
        %505 = vmatpush1.bf16.msra.mxu0 %v471
        %506 = vmatprep.subr.bf16.mxu0 0
        %507 = vmatpush2.bf16.msra.mxu0 0
        %508 = vmatprep.subr.bf16.mxu0 0
        %509 = vmatpush2.bf16.msra.mxu0 0
        %510 = vmatprep.subr.bf16.mxu0 0
        %511 = vmatpush2.bf16.msra.mxu0 0
        %512 = vmatprep.subr.bf16.mxu0 0
        %513 = vmatpush2.bf16.msra.mxu0 0
        %514 = vmatprep.subr.bf16.mxu0 0
        %515 = vmatpush2.bf16.msra.mxu0 0
        %516 = vmatprep.subr.bf16.mxu0 0
        %517 = vmatpush2.bf16.msra.mxu0 0
        %518 = vmatprep.subr.bf16.mxu0 0
        %519 = vmatpush2.bf16.msra.mxu0 0
        %520 = vmatprep.subr.bf16.mxu0 0
        %521 = vmatpush2.bf16.msra.mxu0 0
        %522 = vmatprep.mubr.bf16.mxu0 0
        %523 = vmatmul.mubr.bf16.gmra.mxu0 %v479
        %v524 = vpop.f32.mrf.mxu0
        %v525 = vadd.f32 %v429, %v524
        %v526 = vpop.f32.mrf.mxu0
        %v527 = vadd.f32 %v433, %v526
        %v528 = vpop.f32.mrf.mxu0
        %v529 = vadd.f32 %v429, %v528
        %v530 = vpop.f32.mrf.mxu0
        %v531 = vadd.f32 %v433, %v530
        %532 = vmatprep.mubr.bf16.mxu0 0
        %533 = vmatmul.mubr.bf16.gmra.mxu0 %v482
        %v534 = vpop.f32.mrf.mxu0
        %v535 = vadd.f32 %v429, %v534
        %v536 = vpop.f32.mrf.mxu0
        %v537 = vadd.f32 %v433, %v536
        %v538 = vpop.f32.mrf.mxu0
        %v539 = vadd.f32 %v429, %v538
        %v540 = vpop.f32.mrf.mxu0
        %v541 = vadd.f32 %v433, %v540
        %542 = vmatprep.mubr.bf16.mxu0 0
        %543 = vmatmul.mubr.bf16.gmra.mxu0 %v485
        %v544 = vpop.f32.mrf.mxu0
        %v545 = vadd.f32 %v429, %v544
        %v546 = vpop.f32.mrf.mxu0
        %v547 = vadd.f32 %v433, %v546
        %v548 = vpop.f32.mrf.mxu0
        %v549 = vadd.f32 %v429, %v548
        %v550 = vpop.f32.mrf.mxu0
        %v551 = vadd.f32 %v433, %v550
        %552 = vmatprep.mubr.bf16.mxu0 0
        %553 = vmatmul.mubr.bf16.gmra.mxu0 %v488
        %v554 = vpop.f32.mrf.mxu0
        %v555 = vadd.f32 %v429, %v554
        %v556 = vpop.f32.mrf.mxu0
        %v557 = vadd.f32 %v433, %v556
        %v558 = vpop.f32.mrf.mxu0
        %v559 = vadd.f32 %v429, %v558
        %v560 = vpop.f32.mrf.mxu0
        %v561 = vadd.f32 %v433, %v560
        %562 = vdwg.mxu0
        %563 = vmatprep.subr.bf16.mxu0 0
        %564 = vmatpush1.bf16.msra.mxu0 0
        %565 = vmatprep.subr.bf16.mxu0 0
        %566 = vmatpush1.bf16.msra.mxu0 0
        %567 = vmatprep.subr.bf16.mxu0 0
        %568 = vmatpush1.bf16.msra.mxu0 0
        %569 = vmatprep.subr.bf16.mxu0 0
        %570 = vmatpush1.bf16.msra.mxu0 0
        %571 = vmatprep.subr.bf16.mxu0 0
        %572 = vmatpush1.bf16.msra.mxu0 0
        %573 = vmatprep.subr.bf16.mxu0 0
        %574 = vmatpush1.bf16.msra.mxu0 0
        %575 = vmatprep.subr.bf16.mxu0 0
        %576 = vmatpush1.bf16.msra.mxu0 0
        %577 = vmatprep.subr.bf16.mxu0 0
        %578 = vmatpush1.bf16.msra.mxu0 %v473
        %579 = vmatprep.subr.bf16.mxu0 0
        %580 = vmatpush2.bf16.msra.mxu0 0
        %581 = vmatprep.subr.bf16.mxu0 0
        %582 = vmatpush2.bf16.msra.mxu0 0
        %583 = vmatprep.subr.bf16.mxu0 0
        %584 = vmatpush2.bf16.msra.mxu0 0
        %585 = vmatprep.subr.bf16.mxu0 0
        %586 = vmatpush2.bf16.msra.mxu0 0
        %587 = vmatprep.subr.bf16.mxu0 0
        %588 = vmatpush2.bf16.msra.mxu0 0
        %589 = vmatprep.subr.bf16.mxu0 0
        %590 = vmatpush2.bf16.msra.mxu0 0
        %591 = vmatprep.subr.bf16.mxu0 0
        %592 = vmatpush2.bf16.msra.mxu0 0
        %593 = vmatprep.subr.bf16.mxu0 0
        %594 = vmatpush2.bf16.msra.mxu0 0
        %595 = vmatprep.mubr.bf16.mxu0 0
        %596 = vmatmul.mubr.bf16.gmra.mxu0 %v479
        %v597 = vpop.f32.mrf.mxu0
        %v598 = vadd.f32 %v437, %v597
        %v599 = vpop.f32.mrf.mxu0
        %v600 = vpop.f32.mrf.mxu0
        %v601 = vadd.f32 %v437, %v600
        %v602 = vpop.f32.mrf.mxu0
        %603 = vmatprep.mubr.bf16.mxu0 0
        %604 = vmatmul.mubr.bf16.gmra.mxu0 %v482
        %v605 = vpop.f32.mrf.mxu0
        %v606 = vadd.f32 %v437, %v605
        %v607 = vpop.f32.mrf.mxu0
        %v608 = vpop.f32.mrf.mxu0
        %v609 = vadd.f32 %v437, %v608
        %v610 = vpop.f32.mrf.mxu0
        %611 = vmatprep.mubr.bf16.mxu0 0
        %612 = vmatmul.mubr.bf16.gmra.mxu0 %v485
        %v613 = vpop.f32.mrf.mxu0
        %v614 = vadd.f32 %v437, %v613
        %v615 = vpop.f32.mrf.mxu0
        %v616 = vpop.f32.mrf.mxu0
        %v617 = vadd.f32 %v437, %v616
        %v618 = vpop.f32.mrf.mxu0
        %619 = vmatprep.mubr.bf16.mxu0 0
        %620 = vmatmul.mubr.bf16.gmra.mxu0 %v488
        %v621 = vpop.f32.mrf.mxu0
        %v622 = vadd.f32 %v437, %v621
        %v623 = vpop.f32.mrf.mxu0
        %v624 = vpop.f32.mrf.mxu0
        %v625 = vadd.f32 %v437, %v624
        %v626 = vpop.f32.mrf.mxu0
        %627 = vdwg.mxu0
        %628 = vst [vmem:[#allocation3] sm:$0xff] %v525
        %629 = vst [vmem:[#allocation3 + $0x8] sm:$0xff] %v527
        %630 = vst [vmem:[#allocation3 + $0x10] sm:$0xff] %v598
        %631 = vst [vmem:[#allocation3 + $0x18] sm:$0xff] %v529
        %632 = vst [vmem:[#allocation3 + $0x20] sm:$0xff] %v531
        %633 = vst [vmem:[#allocation3 + $0x28] sm:$0xff] %v601
        %634 = vst [vmem:[#allocation3 + $0x30] sm:$0xff] %v535
        %635 = vst [vmem:[#allocation3 + $0x38] sm:$0xff] %v537
        %636 = vst [vmem:[#allocation3 + $0x40] sm:$0xff] %v606
        %637 = vst [vmem:[#allocation3 + $0x48] sm:$0xff] %v539
        %638 = vst [vmem:[#allocation3 + $0x50] sm:$0xff] %v541
        %639 = vst [vmem:[#allocation3 + $0x58] sm:$0xff] %v609
        %640 = vst [vmem:[#allocation3 + $0x60] sm:$0xff] %v545
        %641 = vst [vmem:[#allocation3 + $0x68] sm:$0xff] %v547
        %642 = vst [vmem:[#allocation3 + $0x70] sm:$0xff] %v614
        %643 = vst [vmem:[#allocation3 + $0x78] sm:$0xff] %v549
        %644 = vst [vmem:[#allocation3 + $0x80] sm:$0xff] %v551
        %645 = vst [vmem:[#allocation3 + $0x88] sm:$0xff] %v617
        %646 = vst [vmem:[#allocation3 + $0x90] sm:$0xff] %v555
        %647 = vst [vmem:[#allocation3 + $0x98] sm:$0xff] %v557
        %648 = vst [vmem:[#allocation3 + $0xa0] sm:$0xff] %v622
        %649 = vst [vmem:[#allocation3 + $0xa8] sm:$0xff] %v559
        %650 = vst [vmem:[#allocation3 + $0xb0] sm:$0xff] %v561
        %651 = vst [vmem:[#allocation3 + $0xb8] sm:$0xff] %v625
        %v652 = vld [vmem:[#allocation4] sm:$0xff]
        %v653 = vld [vmem:[#allocation4 + $0x8] sm:$0xff]
        %v654 = vld [vmem:[#allocation4 + $0x10] sm:$0xff]
        %v655 = vld [vmem:[#allocation4 + $0x18] sm:$0xff]
        %v656 = vld [vmem:[#allocation4 + $0x20] sm:$0xff]
        %v657 = vld [vmem:[#allocation4 + $0x28] sm:$0xff]
        %v658 = vpack.c.bf16 %v414, %v413
        %v691 = vunpack.c.l.b16 %v373
        %v692 = vunpack.c.h.b16 %v373
        %v693 = vunpack.c.l.b16 %v374
        %v694 = vunpack.c.l.b16 %v375
        %v695 = vunpack.c.h.b16 %v375
        %v696 = vunpack.c.l.b16 %v376
        %v697 = vunpack.c.l.b16 %v377
        %v698 = vunpack.c.h.b16 %v377
        %v699 = vunpack.c.l.b16 %v378
        %v700 = vunpack.c.l.b16 %v379
        %v701 = vunpack.c.h.b16 %v379
        %v702 = vunpack.c.l.b16 %v380
        %v703 = vunpack.c.l.b16 %v381
        %v704 = vunpack.c.h.b16 %v381
        %v705 = vunpack.c.l.b16 %v382
        %v706 = vunpack.c.l.b16 %v383
        %v707 = vunpack.c.h.b16 %v383
        %v708 = vunpack.c.l.b16 %v384
        %v709 = vunpack.c.l.b16 %v385
        %v710 = vunpack.c.h.b16 %v385
        %v711 = vunpack.c.l.b16 %v386
        %v712 = vunpack.c.l.b16 %v387
        %v713 = vunpack.c.h.b16 %v387
        %v714 = vunpack.c.l.b16 %v388
        %v715 = vunpack.c.l.b16 %v389
        %v716 = vunpack.c.h.b16 %v389
        %v717 = vunpack.c.l.b16 %v390
        %v718 = vunpack.c.l.b16 %v391
        %v719 = vunpack.c.h.b16 %v391
        %v720 = vunpack.c.l.b16 %v392
        %v721 = vunpack.c.l.b16 %v393
        %v722 = vunpack.c.h.b16 %v393
        %v723 = vunpack.c.l.b16 %v394
        %v724 = vunpack.c.l.b16 %v395
        %v725 = vunpack.c.h.b16 %v395
        %v726 = vunpack.c.l.b16 %v396
        %v727 = vunpack.c.l.b16 %v397
        %v728 = vunpack.c.h.b16 %v397
        %v729 = vunpack.c.l.b16 %v398
        %v730 = vunpack.c.l.b16 %v399
        %v731 = vunpack.c.h.b16 %v399
        %v732 = vunpack.c.l.b16 %v400
        %v733 = vunpack.c.l.b16 %v401
        %v734 = vunpack.c.h.b16 %v401
        %v735 = vunpack.c.l.b16 %v402
        %v736 = vunpack.c.l.b16 %v403
        %v737 = vunpack.c.h.b16 %v403
        %v738 = vunpack.c.l.b16 %v404
        %v739 = vpack.c.b16 %v694, %v691
        %v740 = vpack.c.b16 %v695, %v692
        %v741 = vpack.c.b16 %v696, %v693
        %v742 = vpack.c.b16 %v700, %v697
        %v743 = vpack.c.b16 %v701, %v698
        %v744 = vpack.c.b16 %v702, %v699
        %v745 = vpack.c.b16 %v706, %v703
        %v746 = vpack.c.b16 %v707, %v704
        %v747 = vpack.c.b16 %v708, %v705
        %v748 = vpack.c.b16 %v712, %v709
        %v749 = vpack.c.b16 %v713, %v710
        %v750 = vpack.c.b16 %v714, %v711
        %v751 = vpack.c.b16 %v718, %v715
        %v752 = vpack.c.b16 %v719, %v716
        %v753 = vpack.c.b16 %v720, %v717
        %v754 = vpack.c.b16 %v724, %v721
        %v755 = vpack.c.b16 %v725, %v722
        %v756 = vpack.c.b16 %v726, %v723
        %v757 = vpack.c.b16 %v730, %v727
        %v758 = vpack.c.b16 %v731, %v728
        %v759 = vpack.c.b16 %v732, %v729
        %v760 = vpack.c.b16 %v736, %v733
        %v761 = vpack.c.b16 %v737, %v734
        %v762 = vpack.c.b16 %v738, %v735
        %787 = vmatprep.subr.bf16.mxu0 %v761
        %788 = vmatpush1.bf16.msra.mxu0 %v760
        %789 = vmatprep.subr.bf16.mxu0 %v758
        %790 = vmatpush1.bf16.msra.mxu0 %v757
        %791 = vmatprep.subr.bf16.mxu0 %v755
        %792 = vmatpush1.bf16.msra.mxu0 %v754
        %793 = vmatprep.subr.bf16.mxu0 %v752
        %794 = vmatpush1.bf16.msra.mxu0 %v751
        %795 = vmatprep.subr.bf16.mxu0 %v749
        %796 = vmatpush1.bf16.msra.mxu0 %v748
        %797 = vmatprep.subr.bf16.mxu0 %v746
        %798 = vmatpush1.bf16.msra.mxu0 %v745
        %799 = vmatprep.subr.bf16.mxu0 %v743
        %800 = vmatpush1.bf16.msra.mxu0 %v742
        %801 = vmatprep.subr.bf16.mxu0 %v740
        %802 = vmatpush1.bf16.msra.mxu0 %v739
        %803 = vmatprep.subr.bf16.mxu0 0
        %804 = vmatpush2.bf16.msra.mxu0 0
        %805 = vmatprep.subr.bf16.mxu0 0
        %806 = vmatpush2.bf16.msra.mxu0 0
        %807 = vmatprep.subr.bf16.mxu0 0
        %808 = vmatpush2.bf16.msra.mxu0 0
        %809 = vmatprep.subr.bf16.mxu0 0
        %810 = vmatpush2.bf16.msra.mxu0 0
        %811 = vmatprep.subr.bf16.mxu0 0
        %812 = vmatpush2.bf16.msra.mxu0 0
        %813 = vmatprep.subr.bf16.mxu0 0
        %814 = vmatpush2.bf16.msra.mxu0 0
        %815 = vmatprep.subr.bf16.mxu0 0
        %816 = vmatpush2.bf16.msra.mxu0 0
        %817 = vmatprep.subr.bf16.mxu0 0
        %818 = vmatpush2.bf16.msra.mxu0 0
        %819 = vmatprep.mubr.bf16.mxu0 0
        %820 = vmatmul.mubr.bf16.gmra.mxu0 %v658
        %v821 = vpop.f32.mrf.mxu0
        %v822 = vadd.f32 0.0, %v821
        %v823 = vpop.f32.mrf.mxu0
        %v824 = vadd.f32 0.0, %v823
        %v825 = vpop.f32.mrf.mxu0
        %v826 = vadd.f32 0.0, %v825
        %v827 = vpop.f32.mrf.mxu0
        %v828 = vadd.f32 0.0, %v827
        %829 = vdwg.mxu0
        %830 = vmatprep.subr.bf16.mxu0 0
        %831 = vmatpush1.bf16.msra.mxu0 %v762
        %832 = vmatprep.subr.bf16.mxu0 0
        %833 = vmatpush1.bf16.msra.mxu0 %v759
        %834 = vmatprep.subr.bf16.mxu0 0
        %835 = vmatpush1.bf16.msra.mxu0 %v756
        %836 = vmatprep.subr.bf16.mxu0 0
        %837 = vmatpush1.bf16.msra.mxu0 %v753
        %838 = vmatprep.subr.bf16.mxu0 0
        %839 = vmatpush1.bf16.msra.mxu0 %v750
        %840 = vmatprep.subr.bf16.mxu0 0
        %841 = vmatpush1.bf16.msra.mxu0 %v747
        %842 = vmatprep.subr.bf16.mxu0 0
        %843 = vmatpush1.bf16.msra.mxu0 %v744
        %844 = vmatprep.subr.bf16.mxu0 0
        %845 = vmatpush1.bf16.msra.mxu0 %v741
        %846 = vmatprep.subr.bf16.mxu0 0
        %847 = vmatpush2.bf16.msra.mxu0 0
        %848 = vmatprep.subr.bf16.mxu0 0
        %849 = vmatpush2.bf16.msra.mxu0 0
        %850 = vmatprep.subr.bf16.mxu0 0
        %851 = vmatpush2.bf16.msra.mxu0 0
        %852 = vmatprep.subr.bf16.mxu0 0
        %853 = vmatpush2.bf16.msra.mxu0 0
        %854 = vmatprep.subr.bf16.mxu0 0
        %855 = vmatpush2.bf16.msra.mxu0 0
        %856 = vmatprep.subr.bf16.mxu0 0
        %857 = vmatpush2.bf16.msra.mxu0 0
        %858 = vmatprep.subr.bf16.mxu0 0
        %859 = vmatpush2.bf16.msra.mxu0 0
        %860 = vmatprep.subr.bf16.mxu0 0
        %861 = vmatpush2.bf16.msra.mxu0 0
        %862 = vmatprep.mubr.bf16.mxu0 0
        %863 = vmatmul.mubr.bf16.gmra.mxu0 %v658
        %v864 = vpop.f32.mrf.mxu0
        %v865 = vadd.f32 0.0, %v864
        %v866 = vpop.f32.mrf.mxu0
        %v867 = vpop.f32.mrf.mxu0
        %v868 = vadd.f32 0.0, %v867
        %v869 = vpop.f32.mrf.mxu0
        %870 = vdwg.mxu0
        %v871 = vadd.f32 %v652, %v822
        %v872 = vadd.f32 %v653, %v824
        %v873 = vadd.f32 %v655, %v826
        %v874 = vadd.f32 %v656, %v828
        %v875 = vsub.f32 0.0, %v871
        %v876 = vsub.f32 0.0, %v872
        %v877 = vsub.f32 0.0, %v873
        %v878 = vsub.f32 0.0, %v874
        %v879 = vmul.f32 %v875, 1.442695
        %v880 = vpow.pop %v879
        %v881 = vmul.f32 %v876, 1.442695
        %v882 = vpow.pop %v881
        %v883 = vmul.f32 %v877, 1.442695
        %v884 = vpow.pop %v883
        %v885 = vmul.f32 %v878, 1.442695
        %v886 = vpow.pop %v885
        %v887 = vadd.f32 %v880, 1.0
        %v888 = vadd.f32 %v882, 1.0
        %v889 = vadd.f32 %v884, 1.0
        %v890 = vadd.f32 %v886, 1.0
        %v891 = vrcp.pop %v887
        %v892 = vrcp.pop %v888
        %v893 = vrcp.pop %v889
        %v894 = vrcp.pop %v890
        %v895 = vadd.f32 %v865, %v411
        %v896 = vadd.f32 %v868, %v411
        %v897 = vmul.f32 %v891, %v895
        %v898 = vmul.f32 %v893, %v896
        %v899 = vadd.f32 %v654, %v897
        %v900 = vadd.f32 %v657, %v898
        %v901 = vtanh.pop %v899
        %v902 = vtanh.pop %v900
        %v903 = vsub.f32 %v413, %v901
        %v904 = vsub.f32 %v414, %v902
        %v905 = vmul.f32 %v892, %v903
        %v906 = vmul.f32 %v894, %v904
        %v907 = vadd.f32 %v901, %v905
        %v908 = vadd.f32 %v902, %v906
        %v909 = vld [vmem:[#allocation4 + $0x30] sm:$0xff]
        %v910 = vld [vmem:[#allocation4 + $0x38] sm:$0xff]
        %v911 = vld [vmem:[#allocation4 + $0x40] sm:$0xff]
        %v912 = vld [vmem:[#allocation4 + $0x48] sm:$0xff]
        %v913 = vld [vmem:[#allocation4 + $0x50] sm:$0xff]
        %v914 = vld [vmem:[#allocation4 + $0x58] sm:$0xff]
        %v915 = vpack.c.bf16 %v908, %v907
        %916 = vmatprep.subr.bf16.mxu0 %v761
        %917 = vmatpush1.bf16.msra.mxu0 %v760
        %918 = vmatprep.subr.bf16.mxu0 %v758
        %919 = vmatpush1.bf16.msra.mxu0 %v757
        %920 = vmatprep.subr.bf16.mxu0 %v755
        %921 = vmatpush1.bf16.msra.mxu0 %v754
        %922 = vmatprep.subr.bf16.mxu0 %v752
        %923 = vmatpush1.bf16.msra.mxu0 %v751
        %924 = vmatprep.subr.bf16.mxu0 %v749
        %925 = vmatpush1.bf16.msra.mxu0 %v748
        %926 = vmatprep.subr.bf16.mxu0 %v746
        %927 = vmatpush1.bf16.msra.mxu0 %v745
        %928 = vmatprep.subr.bf16.mxu0 %v743
        %929 = vmatpush1.bf16.msra.mxu0 %v742
        %930 = vmatprep.subr.bf16.mxu0 %v740
        %931 = vmatpush1.bf16.msra.mxu0 %v739
        %932 = vmatprep.subr.bf16.mxu0 0
        %933 = vmatpush2.bf16.msra.mxu0 0
        %934 = vmatprep.subr.bf16.mxu0 0
        %935 = vmatpush2.bf16.msra.mxu0 0
        %936 = vmatprep.subr.bf16.mxu0 0
        %937 = vmatpush2.bf16.msra.mxu0 0
        %938 = vmatprep.subr.bf16.mxu0 0
        %939 = vmatpush2.bf16.msra.mxu0 0
        %940 = vmatprep.subr.bf16.mxu0 0
        %941 = vmatpush2.bf16.msra.mxu0 0
        %942 = vmatprep.subr.bf16.mxu0 0
        %943 = vmatpush2.bf16.msra.mxu0 0
        %944 = vmatprep.subr.bf16.mxu0 0
        %945 = vmatpush2.bf16.msra.mxu0 0
        %946 = vmatprep.subr.bf16.mxu0 0
        %947 = vmatpush2.bf16.msra.mxu0 0
        %948 = vmatprep.mubr.bf16.mxu0 0
        %949 = vmatmul.mubr.bf16.gmra.mxu0 %v915
        %v950 = vpop.f32.mrf.mxu0
        %v951 = vadd.f32 0.0, %v950
        %v952 = vpop.f32.mrf.mxu0
        %v953 = vadd.f32 0.0, %v952
        %v954 = vpop.f32.mrf.mxu0
        %v955 = vadd.f32 0.0, %v954
        %v956 = vpop.f32.mrf.mxu0
        %v957 = vadd.f32 0.0, %v956
        %958 = vdwg.mxu0
        %959 = vmatprep.subr.bf16.mxu0 0
        %960 = vmatpush1.bf16.msra.mxu0 %v762
        %961 = vmatprep.subr.bf16.mxu0 0
        %962 = vmatpush1.bf16.msra.mxu0 %v759
        %963 = vmatprep.subr.bf16.mxu0 0
        %964 = vmatpush1.bf16.msra.mxu0 %v756
        %965 = vmatprep.subr.bf16.mxu0 0
        %966 = vmatpush1.bf16.msra.mxu0 %v753
        %967 = vmatprep.subr.bf16.mxu0 0
        %968 = vmatpush1.bf16.msra.mxu0 %v750
        %969 = vmatprep.subr.bf16.mxu0 0
        %970 = vmatpush1.bf16.msra.mxu0 %v747
        %971 = vmatprep.subr.bf16.mxu0 0
        %972 = vmatpush1.bf16.msra.mxu0 %v744
        %973 = vmatprep.subr.bf16.mxu0 0
        %974 = vmatpush1.bf16.msra.mxu0 %v741
        %975 = vmatprep.subr.bf16.mxu0 0
        %976 = vmatpush2.bf16.msra.mxu0 0
        %977 = vmatprep.subr.bf16.mxu0 0
        %978 = vmatpush2.bf16.msra.mxu0 0
        %979 = vmatprep.subr.bf16.mxu0 0
        %980 = vmatpush2.bf16.msra.mxu0 0
        %981 = vmatprep.subr.bf16.mxu0 0
        %982 = vmatpush2.bf16.msra.mxu0 0
        %983 = vmatprep.subr.bf16.mxu0 0
        %984 = vmatpush2.bf16.msra.mxu0 0
        %985 = vmatprep.subr.bf16.mxu0 0
        %986 = vmatpush2.bf16.msra.mxu0 0
        %987 = vmatprep.subr.bf16.mxu0 0
        %988 = vmatpush2.bf16.msra.mxu0 0
        %989 = vmatprep.subr.bf16.mxu0 0
        %990 = vmatpush2.bf16.msra.mxu0 0
        %991 = vmatprep.mubr.bf16.mxu0 0
        %992 = vmatmul.mubr.bf16.gmra.mxu0 %v915
        %v993 = vpop.f32.mrf.mxu0
        %v994 = vadd.f32 0.0, %v993
        %v995 = vpop.f32.mrf.mxu0
        %v996 = vpop.f32.mrf.mxu0
        %v997 = vadd.f32 0.0, %v996
        %v998 = vpop.f32.mrf.mxu0
        %999 = vdwg.mxu0
        %v1000 = vadd.f32 %v909, %v951
        %v1001 = vadd.f32 %v910, %v953
        %v1002 = vadd.f32 %v912, %v955
        %v1003 = vadd.f32 %v913, %v957
        %v1004 = vsub.f32 0.0, %v1000
        %v1005 = vsub.f32 0.0, %v1001
        %v1006 = vsub.f32 0.0, %v1002
        %v1007 = vsub.f32 0.0, %v1003
        %v1008 = vmul.f32 %v1004, 1.442695
        %v1009 = vpow.pop %v1008
        %v1010 = vmul.f32 %v1005, 1.442695
        %v1011 = vpow.pop %v1010
        %v1012 = vmul.f32 %v1006, 1.442695
        %v1013 = vpow.pop %v1012
        %v1014 = vmul.f32 %v1007, 1.442695
        %v1015 = vpow.pop %v1014
        %v1016 = vadd.f32 %v1009, 1.0
        %v1017 = vadd.f32 %v1011, 1.0
        %v1018 = vadd.f32 %v1013, 1.0
        %v1019 = vadd.f32 %v1015, 1.0
        %v1020 = vrcp.pop %v1016
        %v1021 = vrcp.pop %v1017
        %v1022 = vrcp.pop %v1018
        %v1023 = vrcp.pop %v1019
        %v1024 = vadd.f32 %v994, %v411
        %v1025 = vadd.f32 %v997, %v411
        %v1026 = vmul.f32 %v1020, %v1024
        %v1027 = vmul.f32 %v1022, %v1025
        %v1028 = vadd.f32 %v911, %v1026
        %v1029 = vadd.f32 %v914, %v1027
        %v1030 = vtanh.pop %v1028
        %v1031 = vtanh.pop %v1029
        %v1032 = vsub.f32 %v907, %v1030
        %v1033 = vsub.f32 %v908, %v1031
        %v1034 = vmul.f32 %v1021, %v1032
        %v1035 = vmul.f32 %v1023, %v1033
        %v1036 = vadd.f32 %v1030, %v1034
        %v1037 = vadd.f32 %v1031, %v1035
        %v1038 = vld [vmem:[#allocation4 + $0x60] sm:$0xff]
        %v1039 = vld [vmem:[#allocation4 + $0x68] sm:$0xff]
        %v1040 = vld [vmem:[#allocation4 + $0x70] sm:$0xff]
        %v1041 = vld [vmem:[#allocation4 + $0x78] sm:$0xff]
        %v1042 = vld [vmem:[#allocation4 + $0x80] sm:$0xff]
        %v1043 = vld [vmem:[#allocation4 + $0x88] sm:$0xff]
        %v1044 = vpack.c.bf16 %v1037, %v1036
        %1045 = vmatprep.subr.bf16.mxu0 %v761
        %1046 = vmatpush1.bf16.msra.mxu0 %v760
        %1047 = vmatprep.subr.bf16.mxu0 %v758
        %1048 = vmatpush1.bf16.msra.mxu0 %v757
        %1049 = vmatprep.subr.bf16.mxu0 %v755
        %1050 = vmatpush1.bf16.msra.mxu0 %v754
        %1051 = vmatprep.subr.bf16.mxu0 %v752
        %1052 = vmatpush1.bf16.msra.mxu0 %v751
        %1053 = vmatprep.subr.bf16.mxu0 %v749
        %1054 = vmatpush1.bf16.msra.mxu0 %v748
        %1055 = vmatprep.subr.bf16.mxu0 %v746
        %1056 = vmatpush1.bf16.msra.mxu0 %v745
        %1057 = vmatprep.subr.bf16.mxu0 %v743
        %1058 = vmatpush1.bf16.msra.mxu0 %v742
        %1059 = vmatprep.subr.bf16.mxu0 %v740
        %1060 = vmatpush1.bf16.msra.mxu0 %v739
        %1061 = vmatprep.subr.bf16.mxu0 0
        %1062 = vmatpush2.bf16.msra.mxu0 0
        %1063 = vmatprep.subr.bf16.mxu0 0
        %1064 = vmatpush2.bf16.msra.mxu0 0
        %1065 = vmatprep.subr.bf16.mxu0 0
        %1066 = vmatpush2.bf16.msra.mxu0 0
        %1067 = vmatprep.subr.bf16.mxu0 0
        %1068 = vmatpush2.bf16.msra.mxu0 0
        %1069 = vmatprep.subr.bf16.mxu0 0
        %1070 = vmatpush2.bf16.msra.mxu0 0
        %1071 = vmatprep.subr.bf16.mxu0 0
        %1072 = vmatpush2.bf16.msra.mxu0 0
        %1073 = vmatprep.subr.bf16.mxu0 0
        %1074 = vmatpush2.bf16.msra.mxu0 0
        %1075 = vmatprep.subr.bf16.mxu0 0
        %1076 = vmatpush2.bf16.msra.mxu0 0
        %1077 = vmatprep.mubr.bf16.mxu0 0
        %1078 = vmatmul.mubr.bf16.gmra.mxu0 %v1044
        %v1079 = vpop.f32.mrf.mxu0
        %v1080 = vadd.f32 0.0, %v1079
        %v1081 = vpop.f32.mrf.mxu0
        %v1082 = vadd.f32 0.0, %v1081
        %v1083 = vpop.f32.mrf.mxu0
        %v1084 = vadd.f32 0.0, %v1083
        %v1085 = vpop.f32.mrf.mxu0
        %v1086 = vadd.f32 0.0, %v1085
        %1087 = vdwg.mxu0
        %1088 = vmatprep.subr.bf16.mxu0 0
        %1089 = vmatpush1.bf16.msra.mxu0 %v762
        %1090 = vmatprep.subr.bf16.mxu0 0
        %1091 = vmatpush1.bf16.msra.mxu0 %v759
        %1092 = vmatprep.subr.bf16.mxu0 0
        %1093 = vmatpush1.bf16.msra.mxu0 %v756
        %1094 = vmatprep.subr.bf16.mxu0 0
        %1095 = vmatpush1.bf16.msra.mxu0 %v753
        %1096 = vmatprep.subr.bf16.mxu0 0
        %1097 = vmatpush1.bf16.msra.mxu0 %v750
        %1098 = vmatprep.subr.bf16.mxu0 0
        %1099 = vmatpush1.bf16.msra.mxu0 %v747
        %1100 = vmatprep.subr.bf16.mxu0 0
        %1101 = vmatpush1.bf16.msra.mxu0 %v744
        %1102 = vmatprep.subr.bf16.mxu0 0
        %1103 = vmatpush1.bf16.msra.mxu0 %v741
        %1104 = vmatprep.subr.bf16.mxu0 0
        %1105 = vmatpush2.bf16.msra.mxu0 0
        %1106 = vmatprep.subr.bf16.mxu0 0
        %1107 = vmatpush2.bf16.msra.mxu0 0
        %1108 = vmatprep.subr.bf16.mxu0 0
        %1109 = vmatpush2.bf16.msra.mxu0 0
        %1110 = vmatprep.subr.bf16.mxu0 0
        %1111 = vmatpush2.bf16.msra.mxu0 0
        %1112 = vmatprep.subr.bf16.mxu0 0
        %1113 = vmatpush2.bf16.msra.mxu0 0
        %1114 = vmatprep.subr.bf16.mxu0 0
        %1115 = vmatpush2.bf16.msra.mxu0 0
        %1116 = vmatprep.subr.bf16.mxu0 0
        %1117 = vmatpush2.bf16.msra.mxu0 0
        %1118 = vmatprep.subr.bf16.mxu0 0
        %1119 = vmatpush2.bf16.msra.mxu0 0
        %1120 = vmatprep.mubr.bf16.mxu0 0
        %1121 = vmatmul.mubr.bf16.gmra.mxu0 %v1044
        %v1122 = vpop.f32.mrf.mxu0
        %v1123 = vadd.f32 0.0, %v1122
        %v1124 = vpop.f32.mrf.mxu0
        %v1125 = vpop.f32.mrf.mxu0
        %v1126 = vadd.f32 0.0, %v1125
        %v1127 = vpop.f32.mrf.mxu0
        %1128 = vdwg.mxu0
        %v1129 = vadd.f32 %v1038, %v1080
        %v1130 = vadd.f32 %v1039, %v1082
        %v1131 = vadd.f32 %v1041, %v1084
        %v1132 = vadd.f32 %v1042, %v1086
        %v1133 = vsub.f32 0.0, %v1129
        %v1134 = vsub.f32 0.0, %v1130
        %v1135 = vsub.f32 0.0, %v1131
        %v1136 = vsub.f32 0.0, %v1132
        %v1137 = vmul.f32 %v1133, 1.442695
        %v1138 = vpow.pop %v1137
        %v1139 = vmul.f32 %v1134, 1.442695
        %v1140 = vpow.pop %v1139
        %v1141 = vmul.f32 %v1135, 1.442695
        %v1142 = vpow.pop %v1141
        %v1143 = vmul.f32 %v1136, 1.442695
        %v1144 = vpow.pop %v1143
        %v1145 = vadd.f32 %v1138, 1.0
        %v1146 = vadd.f32 %v1140, 1.0
        %v1147 = vadd.f32 %v1142, 1.0
        %v1148 = vadd.f32 %v1144, 1.0
        %v1149 = vrcp.pop %v1145
        %v1150 = vrcp.pop %v1146
        %v1151 = vrcp.pop %v1147
        %v1152 = vrcp.pop %v1148
        %v1153 = vadd.f32 %v1123, %v411
        %v1154 = vadd.f32 %v1126, %v411
        %v1155 = vmul.f32 %v1149, %v1153
        %v1156 = vmul.f32 %v1151, %v1154
        %v1157 = vadd.f32 %v1040, %v1155
        %v1158 = vadd.f32 %v1043, %v1156
        %v1159 = vtanh.pop %v1157
        %v1160 = vtanh.pop %v1158
        %v1161 = vsub.f32 %v1036, %v1159
        %v1162 = vsub.f32 %v1037, %v1160
        %v1163 = vmul.f32 %v1150, %v1161
        %v1164 = vmul.f32 %v1152, %v1162
        %v1165 = vadd.f32 %v1159, %v1163
        %v1166 = vadd.f32 %v1160, %v1164
        %v1167 = vld [vmem:[#allocation4 + $0x90] sm:$0xff]
        %v1168 = vld [vmem:[#allocation4 + $0x98] sm:$0xff]
        %v1169 = vld [vmem:[#allocation4 + $0xa0] sm:$0xff]
        %v1170 = vld [vmem:[#allocation4 + $0xa8] sm:$0xff]
        %v1171 = vld [vmem:[#allocation4 + $0xb0] sm:$0xff]
        %v1172 = vld [vmem:[#allocation4 + $0xb8] sm:$0xff]
        %v1173 = vpack.c.bf16 %v1166, %v1165
        %1174 = vmatprep.subr.bf16.mxu0 %v761
        %1175 = vmatpush1.bf16.msra.mxu0 %v760
        %1176 = vmatprep.subr.bf16.mxu0 %v758
        %1177 = vmatpush1.bf16.msra.mxu0 %v757
        %1178 = vmatprep.subr.bf16.mxu0 %v755
        %1179 = vmatpush1.bf16.msra.mxu0 %v754
        %1180 = vmatprep.subr.bf16.mxu0 %v752
        %1181 = vmatpush1.bf16.msra.mxu0 %v751
        %1182 = vmatprep.subr.bf16.mxu0 %v749
        %1183 = vmatpush1.bf16.msra.mxu0 %v748
        %1184 = vmatprep.subr.bf16.mxu0 %v746
        %1185 = vmatpush1.bf16.msra.mxu0 %v745
        %1186 = vmatprep.subr.bf16.mxu0 %v743
        %1187 = vmatpush1.bf16.msra.mxu0 %v742
        %1188 = vmatprep.subr.bf16.mxu0 %v740
        %1189 = vmatpush1.bf16.msra.mxu0 %v739
        %1190 = vmatprep.subr.bf16.mxu0 0
        %1191 = vmatpush2.bf16.msra.mxu0 0
        %1192 = vmatprep.subr.bf16.mxu0 0
        %1193 = vmatpush2.bf16.msra.mxu0 0
        %1194 = vmatprep.subr.bf16.mxu0 0
        %1195 = vmatpush2.bf16.msra.mxu0 0
        %1196 = vmatprep.subr.bf16.mxu0 0
        %1197 = vmatpush2.bf16.msra.mxu0 0
        %1198 = vmatprep.subr.bf16.mxu0 0
        %1199 = vmatpush2.bf16.msra.mxu0 0
        %1200 = vmatprep.subr.bf16.mxu0 0
        %1201 = vmatpush2.bf16.msra.mxu0 0
        %1202 = vmatprep.subr.bf16.mxu0 0
        %1203 = vmatpush2.bf16.msra.mxu0 0
        %1204 = vmatprep.subr.bf16.mxu0 0
        %1205 = vmatpush2.bf16.msra.mxu0 0
        %1206 = vmatprep.mubr.bf16.mxu0 0
        %1207 = vmatmul.mubr.bf16.gmra.mxu0 %v1173
        %v1208 = vpop.f32.mrf.mxu0
        %v1209 = vadd.f32 0.0, %v1208
        %v1210 = vpop.f32.mrf.mxu0
        %v1211 = vadd.f32 0.0, %v1210
        %v1212 = vpop.f32.mrf.mxu0
        %v1213 = vadd.f32 0.0, %v1212
        %v1214 = vpop.f32.mrf.mxu0
        %v1215 = vadd.f32 0.0, %v1214
        %1216 = vdwg.mxu0
        %1217 = vmatprep.subr.bf16.mxu0 0
        %1218 = vmatpush1.bf16.msra.mxu0 %v762
        %1219 = vmatprep.subr.bf16.mxu0 0
        %1220 = vmatpush1.bf16.msra.mxu0 %v759
        %1221 = vmatprep.subr.bf16.mxu0 0
        %1222 = vmatpush1.bf16.msra.mxu0 %v756
        %1223 = vmatprep.subr.bf16.mxu0 0
        %1224 = vmatpush1.bf16.msra.mxu0 %v753
        %1225 = vmatprep.subr.bf16.mxu0 0
        %1226 = vmatpush1.bf16.msra.mxu0 %v750
        %1227 = vmatprep.subr.bf16.mxu0 0
        %1228 = vmatpush1.bf16.msra.mxu0 %v747
        %1229 = vmatprep.subr.bf16.mxu0 0
        %1230 = vmatpush1.bf16.msra.mxu0 %v744
        %1231 = vmatprep.subr.bf16.mxu0 0
        %1232 = vmatpush1.bf16.msra.mxu0 %v741
        %1233 = vmatprep.subr.bf16.mxu0 0
        %1234 = vmatpush2.bf16.msra.mxu0 0
        %1235 = vmatprep.subr.bf16.mxu0 0
        %1236 = vmatpush2.bf16.msra.mxu0 0
        %1237 = vmatprep.subr.bf16.mxu0 0
        %1238 = vmatpush2.bf16.msra.mxu0 0
        %1239 = vmatprep.subr.bf16.mxu0 0
        %1240 = vmatpush2.bf16.msra.mxu0 0
        %1241 = vmatprep.subr.bf16.mxu0 0
        %1242 = vmatpush2.bf16.msra.mxu0 0
        %1243 = vmatprep.subr.bf16.mxu0 0
        %1244 = vmatpush2.bf16.msra.mxu0 0
        %1245 = vmatprep.subr.bf16.mxu0 0
        %1246 = vmatpush2.bf16.msra.mxu0 0
        %1247 = vmatprep.subr.bf16.mxu0 0
        %1248 = vmatpush2.bf16.msra.mxu0 0
        %1249 = vmatprep.mubr.bf16.mxu0 0
        %1250 = vmatmul.mubr.bf16.gmra.mxu0 %v1173
        %v1251 = vpop.f32.mrf.mxu0
        %v1252 = vadd.f32 0.0, %v1251
        %v1253 = vpop.f32.mrf.mxu0
        %v1254 = vpop.f32.mrf.mxu0
        %v1255 = vadd.f32 0.0, %v1254
        %v1256 = vpop.f32.mrf.mxu0
        %1257 = vdwg.mxu0
        %v1258 = vadd.f32 %v1167, %v1209
        %v1259 = vadd.f32 %v1168, %v1211
        %v1260 = vadd.f32 %v1170, %v1213
        %v1261 = vadd.f32 %v1171, %v1215
        %v1262 = vsub.f32 0.0, %v1258
        %v1263 = vsub.f32 0.0, %v1259
        %v1264 = vsub.f32 0.0, %v1260
        %v1265 = vsub.f32 0.0, %v1261
        %v1266 = vmul.f32 %v1262, 1.442695
        %v1267 = vpow.pop %v1266
        %v1268 = vmul.f32 %v1263, 1.442695
        %v1269 = vpow.pop %v1268
        %v1270 = vmul.f32 %v1264, 1.442695
        %v1271 = vpow.pop %v1270
        %v1272 = vmul.f32 %v1265, 1.442695
        %v1273 = vpow.pop %v1272
        %v1274 = vadd.f32 %v1267, 1.0
        %v1275 = vadd.f32 %v1269, 1.0
        %v1276 = vadd.f32 %v1271, 1.0
        %v1277 = vadd.f32 %v1273, 1.0
        %v1278 = vrcp.pop %v1274
        %v1279 = vrcp.pop %v1275
        %v1280 = vrcp.pop %v1276
        %v1281 = vrcp.pop %v1277
        %v1282 = vadd.f32 %v1252, %v411
        %v1283 = vadd.f32 %v1255, %v411
        %v1284 = vmul.f32 %v1278, %v1282
        %v1285 = vmul.f32 %v1280, %v1283
        %v1286 = vadd.f32 %v1169, %v1284
        %v1287 = vadd.f32 %v1172, %v1285
        %v1288 = vtanh.pop %v1286
        %v1289 = vtanh.pop %v1287
        %v1290 = vsub.f32 %v1165, %v1288
        %v1291 = vsub.f32 %v1166, %v1289
        %v1292 = vmul.f32 %v1279, %v1290
        %v1293 = vmul.f32 %v1281, %v1291
        %v1294 = vadd.f32 %v1288, %v1292
        %v1295 = vadd.f32 %v1289, %v1293
        %p1296 = scmp.ge.s32.totalorder %s29, 1
        %s1297 = smul.u32 %s416, 4
        %p1298 = scmp.lt.s32.totalorder %s1297, 8
        %p1299 = pnand %p1296, %p1298
        %p1300 = pneg %p1299
        %s1301 = scalar_select %p1300, 1, 0
        %v1302 = vstv %s1301
        %vm1303 = vcmp.eq.s32.totalorder %v1302, 1
        %v1304 = vsel %vm1303, %v1294, %v413
        %v1305 = vsel %vm1303, %v1295, %v414
        %s1306 = scalar_lea.vmem %s319, 32 [#allocation5]
        %v1307 = vld [vmem:[%s1306] sm:$0xf]
        %v1308 = vld [vmem:[%s1306 + $0x4] sm:$0xf]
        %v1309 = vld [vmem:[%s1306 + $0x8] sm:$0xf]
        %v1310 = vld [vmem:[%s1306 + $0xc] sm:$0xf]
        %v1311 = vld [vmem:[%s1306 + $0x10] sm:$0xf]
        %v1312 = vld [vmem:[%s1306 + $0x14] sm:$0xf]
        %v1313 = vld [vmem:[%s1306 + $0x18] sm:$0xf]
        %v1314 = vld [vmem:[%s1306 + $0x1c] sm:$0xf]
        %v1323 = vunpack.c.l.b16 %v1307
        %v1324 = vunpack.c.l.b16 %v1308
        %v1325 = vunpack.c.l.b16 %v1309
        %v1326 = vunpack.c.l.b16 %v1310
        %v1327 = vunpack.c.l.b16 %v1311
        %v1328 = vunpack.c.l.b16 %v1312
        %v1329 = vunpack.c.l.b16 %v1313
        %v1330 = vunpack.c.l.b16 %v1314
        %v1331 = vpack.c.b16 %v1324, %v1323
        %v1332 = vpack.c.b16 %v1326, %v1325
        %v1333 = vpack.c.b16 %v1328, %v1327
        %v1334 = vpack.c.b16 %v1330, %v1329
        %v1336 = vsel %vm477, %v1331, 0
        %v1339 = vsel %vm477, %v1332, 0
        %v1342 = vsel %vm477, %v1333, 0
        %v1345 = vsel %vm477, %v1334, 0
        %1347 = vmatprep.subr.bf16.mxu0 0
        %1348 = vmatpush1.bf16.msra.mxu0 0
        %1349 = vmatprep.subr.bf16.mxu0 0
        %1350 = vmatpush1.bf16.msra.mxu0 0
        %1351 = vmatprep.subr.bf16.mxu0 0
        %1352 = vmatpush1.bf16.msra.mxu0 0
        %1353 = vmatprep.subr.bf16.mxu0 0
        %1354 = vmatpush1.bf16.msra.mxu0 0
        %1355 = vmatprep.subr.bf16.mxu0 0
        %1356 = vmatpush1.bf16.msra.mxu0 0
        %1357 = vmatprep.subr.bf16.mxu0 0
        %1358 = vmatpush1.bf16.msra.mxu0 0
        %1359 = vmatprep.subr.bf16.mxu0 0
        %1360 = vmatpush1.bf16.msra.mxu0 0
        %1361 = vmatprep.subr.bf16.mxu0 %v472
        %1362 = vmatpush1.bf16.msra.mxu0 %v471
        %1363 = vmatprep.subr.bf16.mxu0 0
        %1364 = vmatpush2.bf16.msra.mxu0 0
        %1365 = vmatprep.subr.bf16.mxu0 0
        %1366 = vmatpush2.bf16.msra.mxu0 0
        %1367 = vmatprep.subr.bf16.mxu0 0
        %1368 = vmatpush2.bf16.msra.mxu0 0
        %1369 = vmatprep.subr.bf16.mxu0 0
        %1370 = vmatpush2.bf16.msra.mxu0 0
        %1371 = vmatprep.subr.bf16.mxu0 0
        %1372 = vmatpush2.bf16.msra.mxu0 0
        %1373 = vmatprep.subr.bf16.mxu0 0
        %1374 = vmatpush2.bf16.msra.mxu0 0
        %1375 = vmatprep.subr.bf16.mxu0 0
        %1376 = vmatpush2.bf16.msra.mxu0 0
        %1377 = vmatprep.subr.bf16.mxu0 0
        %1378 = vmatpush2.bf16.msra.mxu0 0
        %1379 = vmatprep.mubr.bf16.mxu0 0
        %1380 = vmatmul.mubr.bf16.gmra.mxu0 %v1336
        %v1381 = vpop.f32.mrf.mxu0
        %v1382 = vadd.f32 %v429, %v1381
        %v1383 = vpop.f32.mrf.mxu0
        %v1384 = vadd.f32 %v433, %v1383
        %v1385 = vpop.f32.mrf.mxu0
        %v1386 = vadd.f32 %v429, %v1385
        %v1387 = vpop.f32.mrf.mxu0
        %v1388 = vadd.f32 %v433, %v1387
        %1389 = vmatprep.mubr.bf16.mxu0 0
        %1390 = vmatmul.mubr.bf16.gmra.mxu0 %v1339
        %v1391 = vpop.f32.mrf.mxu0
        %v1392 = vadd.f32 %v429, %v1391
        %v1393 = vpop.f32.mrf.mxu0
        %v1394 = vadd.f32 %v433, %v1393
        %v1395 = vpop.f32.mrf.mxu0
        %v1396 = vadd.f32 %v429, %v1395
        %v1397 = vpop.f32.mrf.mxu0
        %v1398 = vadd.f32 %v433, %v1397
        %1399 = vmatprep.mubr.bf16.mxu0 0
        %1400 = vmatmul.mubr.bf16.gmra.mxu0 %v1342
        %v1401 = vpop.f32.mrf.mxu0
        %v1402 = vadd.f32 %v429, %v1401
        %v1403 = vpop.f32.mrf.mxu0
        %v1404 = vadd.f32 %v433, %v1403
        %v1405 = vpop.f32.mrf.mxu0
        %v1406 = vadd.f32 %v429, %v1405
        %v1407 = vpop.f32.mrf.mxu0
        %v1408 = vadd.f32 %v433, %v1407
        %1409 = vmatprep.mubr.bf16.mxu0 0
        %1410 = vmatmul.mubr.bf16.gmra.mxu0 %v1345
        %v1411 = vpop.f32.mrf.mxu0
        %v1412 = vadd.f32 %v429, %v1411
        %v1413 = vpop.f32.mrf.mxu0
        %v1414 = vadd.f32 %v433, %v1413
        %v1415 = vpop.f32.mrf.mxu0
        %v1416 = vadd.f32 %v429, %v1415
        %v1417 = vpop.f32.mrf.mxu0
        %v1418 = vadd.f32 %v433, %v1417
        %1419 = vdwg.mxu0
        %1420 = vmatprep.subr.bf16.mxu0 0
        %1421 = vmatpush1.bf16.msra.mxu0 0
        %1422 = vmatprep.subr.bf16.mxu0 0
        %1423 = vmatpush1.bf16.msra.mxu0 0
        %1424 = vmatprep.subr.bf16.mxu0 0
        %1425 = vmatpush1.bf16.msra.mxu0 0
        %1426 = vmatprep.subr.bf16.mxu0 0
        %1427 = vmatpush1.bf16.msra.mxu0 0
        %1428 = vmatprep.subr.bf16.mxu0 0
        %1429 = vmatpush1.bf16.msra.mxu0 0
        %1430 = vmatprep.subr.bf16.mxu0 0
        %1431 = vmatpush1.bf16.msra.mxu0 0
        %1432 = vmatprep.subr.bf16.mxu0 0
        %1433 = vmatpush1.bf16.msra.mxu0 0
        %1434 = vmatprep.subr.bf16.mxu0 0
        %1435 = vmatpush1.bf16.msra.mxu0 %v473
        %1436 = vmatprep.subr.bf16.mxu0 0
        %1437 = vmatpush2.bf16.msra.mxu0 0
        %1438 = vmatprep.subr.bf16.mxu0 0
        %1439 = vmatpush2.bf16.msra.mxu0 0
        %1440 = vmatprep.subr.bf16.mxu0 0
        %1441 = vmatpush2.bf16.msra.mxu0 0
        %1442 = vmatprep.subr.bf16.mxu0 0
        %1443 = vmatpush2.bf16.msra.mxu0 0
        %1444 = vmatprep.subr.bf16.mxu0 0
        %1445 = vmatpush2.bf16.msra.mxu0 0
        %1446 = vmatprep.subr.bf16.mxu0 0
        %1447 = vmatpush2.bf16.msra.mxu0 0
        %1448 = vmatprep.subr.bf16.mxu0 0
        %1449 = vmatpush2.bf16.msra.mxu0 0
        %1450 = vmatprep.subr.bf16.mxu0 0
        %1451 = vmatpush2.bf16.msra.mxu0 0
        %1452 = vmatprep.mubr.bf16.mxu0 0
        %1453 = vmatmul.mubr.bf16.gmra.mxu0 %v1336
        %v1454 = vpop.f32.mrf.mxu0
        %v1455 = vadd.f32 %v437, %v1454
        %v1456 = vpop.f32.mrf.mxu0
        %v1457 = vpop.f32.mrf.mxu0
        %v1458 = vadd.f32 %v437, %v1457
        %v1459 = vpop.f32.mrf.mxu0
        %1460 = vmatprep.mubr.bf16.mxu0 0
        %1461 = vmatmul.mubr.bf16.gmra.mxu0 %v1339
        %v1462 = vpop.f32.mrf.mxu0
        %v1463 = vadd.f32 %v437, %v1462
        %v1464 = vpop.f32.mrf.mxu0
        %v1465 = vpop.f32.mrf.mxu0
        %v1466 = vadd.f32 %v437, %v1465
        %v1467 = vpop.f32.mrf.mxu0
        %1468 = vmatprep.mubr.bf16.mxu0 0
        %1469 = vmatmul.mubr.bf16.gmra.mxu0 %v1342
        %v1470 = vpop.f32.mrf.mxu0
        %v1471 = vadd.f32 %v437, %v1470
        %v1472 = vpop.f32.mrf.mxu0
        %v1473 = vpop.f32.mrf.mxu0
        %v1474 = vadd.f32 %v437, %v1473
        %v1475 = vpop.f32.mrf.mxu0
        %1476 = vmatprep.mubr.bf16.mxu0 0
        %1477 = vmatmul.mubr.bf16.gmra.mxu0 %v1345
        %v1478 = vpop.f32.mrf.mxu0
        %v1479 = vadd.f32 %v437, %v1478
        %v1480 = vpop.f32.mrf.mxu0
        %v1481 = vpop.f32.mrf.mxu0
        %v1482 = vadd.f32 %v437, %v1481
        %v1483 = vpop.f32.mrf.mxu0
        %1484 = vdwg.mxu0
        %1485 = vst [vmem:[#allocation4] sm:$0xff] %v1382
        %1486 = vst [vmem:[#allocation4 + $0x8] sm:$0xff] %v1384
        %1487 = vst [vmem:[#allocation4 + $0x10] sm:$0xff] %v1455
        %1488 = vst [vmem:[#allocation4 + $0x18] sm:$0xff] %v1386
        %1489 = vst [vmem:[#allocation4 + $0x20] sm:$0xff] %v1388
        %1490 = vst [vmem:[#allocation4 + $0x28] sm:$0xff] %v1458
        %1491 = vst [vmem:[#allocation4 + $0x30] sm:$0xff] %v1392
        %1492 = vst [vmem:[#allocation4 + $0x38] sm:$0xff] %v1394
        %1493 = vst [vmem:[#allocation4 + $0x40] sm:$0xff] %v1463
        %1494 = vst [vmem:[#allocation4 + $0x48] sm:$0xff] %v1396
        %1495 = vst [vmem:[#allocation4 + $0x50] sm:$0xff] %v1398
        %1496 = vst [vmem:[#allocation4 + $0x58] sm:$0xff] %v1466
        %1497 = vst [vmem:[#allocation4 + $0x60] sm:$0xff] %v1402
        %1498 = vst [vmem:[#allocation4 + $0x68] sm:$0xff] %v1404
        %1499 = vst [vmem:[#allocation4 + $0x70] sm:$0xff] %v1471
        %1500 = vst [vmem:[#allocation4 + $0x78] sm:$0xff] %v1406
        %1501 = vst [vmem:[#allocation4 + $0x80] sm:$0xff] %v1408
        %1502 = vst [vmem:[#allocation4 + $0x88] sm:$0xff] %v1474
        %1503 = vst [vmem:[#allocation4 + $0x90] sm:$0xff] %v1412
        %1504 = vst [vmem:[#allocation4 + $0x98] sm:$0xff] %v1414
        %1505 = vst [vmem:[#allocation4 + $0xa0] sm:$0xff] %v1479
        %1506 = vst [vmem:[#allocation4 + $0xa8] sm:$0xff] %v1416
        %1507 = vst [vmem:[#allocation4 + $0xb0] sm:$0xff] %v1418
        %1508 = vst [vmem:[#allocation4 + $0xb8] sm:$0xff] %v1482
        %v1509 = vld [vmem:[#allocation3] sm:$0xff]
        %v1510 = vld [vmem:[#allocation3 + $0x8] sm:$0xff]
        %v1511 = vld [vmem:[#allocation3 + $0x10] sm:$0xff]
        %v1512 = vld [vmem:[#allocation3 + $0x18] sm:$0xff]
        %v1513 = vld [vmem:[#allocation3 + $0x20] sm:$0xff]
        %v1514 = vld [vmem:[#allocation3 + $0x28] sm:$0xff]
        %v1515 = vpack.c.bf16 %v1305, %v1304
        %1516 = vmatprep.subr.bf16.mxu0 %v761
        %1517 = vmatpush1.bf16.msra.mxu0 %v760
        %1518 = vmatprep.subr.bf16.mxu0 %v758
        %1519 = vmatpush1.bf16.msra.mxu0 %v757
        %1520 = vmatprep.subr.bf16.mxu0 %v755
        %1521 = vmatpush1.bf16.msra.mxu0 %v754
        %1522 = vmatprep.subr.bf16.mxu0 %v752
        %1523 = vmatpush1.bf16.msra.mxu0 %v751
        %1524 = vmatprep.subr.bf16.mxu0 %v749
        %1525 = vmatpush1.bf16.msra.mxu0 %v748
        %1526 = vmatprep.subr.bf16.mxu0 %v746
        %1527 = vmatpush1.bf16.msra.mxu0 %v745
        %1528 = vmatprep.subr.bf16.mxu0 %v743
        %1529 = vmatpush1.bf16.msra.mxu0 %v742
        %1530 = vmatprep.subr.bf16.mxu0 %v740
        %1531 = vmatpush1.bf16.msra.mxu0 %v739
        %1532 = vmatprep.subr.bf16.mxu0 0
        %1533 = vmatpush2.bf16.msra.mxu0 0
        %1534 = vmatprep.subr.bf16.mxu0 0
        %1535 = vmatpush2.bf16.msra.mxu0 0
        %1536 = vmatprep.subr.bf16.mxu0 0
        %1537 = vmatpush2.bf16.msra.mxu0 0
        %1538 = vmatprep.subr.bf16.mxu0 0
        %1539 = vmatpush2.bf16.msra.mxu0 0
        %1540 = vmatprep.subr.bf16.mxu0 0
        %1541 = vmatpush2.bf16.msra.mxu0 0
        %1542 = vmatprep.subr.bf16.mxu0 0
        %1543 = vmatpush2.bf16.msra.mxu0 0
        %1544 = vmatprep.subr.bf16.mxu0 0
        %1545 = vmatpush2.bf16.msra.mxu0 0
        %1546 = vmatprep.subr.bf16.mxu0 0
        %1547 = vmatpush2.bf16.msra.mxu0 0
        %1548 = vmatprep.mubr.bf16.mxu0 0
        %1549 = vmatmul.mubr.bf16.gmra.mxu0 %v1515
        %v1550 = vpop.f32.mrf.mxu0
        %v1551 = vadd.f32 0.0, %v1550
        %v1552 = vpop.f32.mrf.mxu0
        %v1553 = vadd.f32 0.0, %v1552
        %v1554 = vpop.f32.mrf.mxu0
        %v1555 = vadd.f32 0.0, %v1554
        %v1556 = vpop.f32.mrf.mxu0
        %v1557 = vadd.f32 0.0, %v1556
        %1558 = vdwg.mxu0
        %1559 = vmatprep.subr.bf16.mxu0 0
        %1560 = vmatpush1.bf16.msra.mxu0 %v762
        %1561 = vmatprep.subr.bf16.mxu0 0
        %1562 = vmatpush1.bf16.msra.mxu0 %v759
        %1563 = vmatprep.subr.bf16.mxu0 0
        %1564 = vmatpush1.bf16.msra.mxu0 %v756
        %1565 = vmatprep.subr.bf16.mxu0 0
        %1566 = vmatpush1.bf16.msra.mxu0 %v753
        %1567 = vmatprep.subr.bf16.mxu0 0
        %1568 = vmatpush1.bf16.msra.mxu0 %v750
        %1569 = vmatprep.subr.bf16.mxu0 0
        %1570 = vmatpush1.bf16.msra.mxu0 %v747
        %1571 = vmatprep.subr.bf16.mxu0 0
        %1572 = vmatpush1.bf16.msra.mxu0 %v744
        %1573 = vmatprep.subr.bf16.mxu0 0
        %1574 = vmatpush1.bf16.msra.mxu0 %v741
        %1575 = vmatprep.subr.bf16.mxu0 0
        %1576 = vmatpush2.bf16.msra.mxu0 0
        %1577 = vmatprep.subr.bf16.mxu0 0
        %1578 = vmatpush2.bf16.msra.mxu0 0
        %1579 = vmatprep.subr.bf16.mxu0 0
        %1580 = vmatpush2.bf16.msra.mxu0 0
        %1581 = vmatprep.subr.bf16.mxu0 0
        %1582 = vmatpush2.bf16.msra.mxu0 0
        %1583 = vmatprep.subr.bf16.mxu0 0
        %1584 = vmatpush2.bf16.msra.mxu0 0
        %1585 = vmatprep.subr.bf16.mxu0 0
        %1586 = vmatpush2.bf16.msra.mxu0 0
        %1587 = vmatprep.subr.bf16.mxu0 0
        %1588 = vmatpush2.bf16.msra.mxu0 0
        %1589 = vmatprep.subr.bf16.mxu0 0
        %1590 = vmatpush2.bf16.msra.mxu0 0
        %1591 = vmatprep.mubr.bf16.mxu0 0
        %1592 = vmatmul.mubr.bf16.gmra.mxu0 %v1515
        %v1593 = vpop.f32.mrf.mxu0
        %v1594 = vadd.f32 0.0, %v1593
        %v1595 = vpop.f32.mrf.mxu0
        %v1596 = vpop.f32.mrf.mxu0
        %v1597 = vadd.f32 0.0, %v1596
        %v1598 = vpop.f32.mrf.mxu0
        %1599 = vdwg.mxu0
        %v1600 = vadd.f32 %v1509, %v1551
        %v1601 = vadd.f32 %v1510, %v1553
        %v1602 = vadd.f32 %v1512, %v1555
        %v1603 = vadd.f32 %v1513, %v1557
        %v1604 = vsub.f32 0.0, %v1600
        %v1605 = vsub.f32 0.0, %v1601
        %v1606 = vsub.f32 0.0, %v1602
        %v1607 = vsub.f32 0.0, %v1603
        %v1608 = vmul.f32 %v1604, 1.442695
        %v1609 = vpow.pop %v1608
        %v1610 = vmul.f32 %v1605, 1.442695
        %v1611 = vpow.pop %v1610
        %v1612 = vmul.f32 %v1606, 1.442695
        %v1613 = vpow.pop %v1612
        %v1614 = vmul.f32 %v1607, 1.442695
        %v1615 = vpow.pop %v1614
        %v1616 = vadd.f32 %v1609, 1.0
        %v1617 = vadd.f32 %v1611, 1.0
        %v1618 = vadd.f32 %v1613, 1.0
        %v1619 = vadd.f32 %v1615, 1.0
        %v1620 = vrcp.pop %v1616
        %v1621 = vrcp.pop %v1617
        %v1622 = vrcp.pop %v1618
        %v1623 = vrcp.pop %v1619
        %v1624 = vadd.f32 %v1594, %v411
        %v1625 = vadd.f32 %v1597, %v411
        %v1626 = vmul.f32 %v1620, %v1624
        %v1627 = vmul.f32 %v1622, %v1625
        %v1628 = vadd.f32 %v1511, %v1626
        %v1629 = vadd.f32 %v1514, %v1627
        %v1630 = vtanh.pop %v1628
        %v1631 = vtanh.pop %v1629
        %v1632 = vsub.f32 %v1304, %v1630
        %v1633 = vsub.f32 %v1305, %v1631
        %v1634 = vmul.f32 %v1621, %v1632
        %v1635 = vmul.f32 %v1623, %v1633
        %v1636 = vadd.f32 %v1630, %v1634
        %v1637 = vadd.f32 %v1631, %v1635
        %v1638 = vld [vmem:[#allocation3 + $0x30] sm:$0xff]
        %v1639 = vld [vmem:[#allocation3 + $0x38] sm:$0xff]
        %v1640 = vld [vmem:[#allocation3 + $0x40] sm:$0xff]
        %v1641 = vld [vmem:[#allocation3 + $0x48] sm:$0xff]
        %v1642 = vld [vmem:[#allocation3 + $0x50] sm:$0xff]
        %v1643 = vld [vmem:[#allocation3 + $0x58] sm:$0xff]
        %v1644 = vpack.c.bf16 %v1637, %v1636
        %1645 = vmatprep.subr.bf16.mxu0 %v761
        %1646 = vmatpush1.bf16.msra.mxu0 %v760
        %1647 = vmatprep.subr.bf16.mxu0 %v758
        %1648 = vmatpush1.bf16.msra.mxu0 %v757
        %1649 = vmatprep.subr.bf16.mxu0 %v755
        %1650 = vmatpush1.bf16.msra.mxu0 %v754
        %1651 = vmatprep.subr.bf16.mxu0 %v752
        %1652 = vmatpush1.bf16.msra.mxu0 %v751
        %1653 = vmatprep.subr.bf16.mxu0 %v749
        %1654 = vmatpush1.bf16.msra.mxu0 %v748
        %1655 = vmatprep.subr.bf16.mxu0 %v746
        %1656 = vmatpush1.bf16.msra.mxu0 %v745
        %1657 = vmatprep.subr.bf16.mxu0 %v743
        %1658 = vmatpush1.bf16.msra.mxu0 %v742
        %1659 = vmatprep.subr.bf16.mxu0 %v740
        %1660 = vmatpush1.bf16.msra.mxu0 %v739
        %1661 = vmatprep.subr.bf16.mxu0 0
        %1662 = vmatpush2.bf16.msra.mxu0 0
        %1663 = vmatprep.subr.bf16.mxu0 0
        %1664 = vmatpush2.bf16.msra.mxu0 0
        %1665 = vmatprep.subr.bf16.mxu0 0
        %1666 = vmatpush2.bf16.msra.mxu0 0
        %1667 = vmatprep.subr.bf16.mxu0 0
        %1668 = vmatpush2.bf16.msra.mxu0 0
        %1669 = vmatprep.subr.bf16.mxu0 0
        %1670 = vmatpush2.bf16.msra.mxu0 0
        %1671 = vmatprep.subr.bf16.mxu0 0
        %1672 = vmatpush2.bf16.msra.mxu0 0
        %1673 = vmatprep.subr.bf16.mxu0 0
        %1674 = vmatpush2.bf16.msra.mxu0 0
        %1675 = vmatprep.subr.bf16.mxu0 0
        %1676 = vmatpush2.bf16.msra.mxu0 0
        %1677 = vmatprep.mubr.bf16.mxu0 0
        %1678 = vmatmul.mubr.bf16.gmra.mxu0 %v1644
        %v1679 = vpop.f32.mrf.mxu0
        %v1680 = vadd.f32 0.0, %v1679
        %v1681 = vpop.f32.mrf.mxu0
        %v1682 = vadd.f32 0.0, %v1681
        %v1683 = vpop.f32.mrf.mxu0
        %v1684 = vadd.f32 0.0, %v1683
        %v1685 = vpop.f32.mrf.mxu0
        %v1686 = vadd.f32 0.0, %v1685
        %1687 = vdwg.mxu0
        %1688 = vmatprep.subr.bf16.mxu0 0
        %1689 = vmatpush1.bf16.msra.mxu0 %v762
        %1690 = vmatprep.subr.bf16.mxu0 0
        %1691 = vmatpush1.bf16.msra.mxu0 %v759
        %1692 = vmatprep.subr.bf16.mxu0 0
        %1693 = vmatpush1.bf16.msra.mxu0 %v756
        %1694 = vmatprep.subr.bf16.mxu0 0
        %1695 = vmatpush1.bf16.msra.mxu0 %v753
        %1696 = vmatprep.subr.bf16.mxu0 0
        %1697 = vmatpush1.bf16.msra.mxu0 %v750
        %1698 = vmatprep.subr.bf16.mxu0 0
        %1699 = vmatpush1.bf16.msra.mxu0 %v747
        %1700 = vmatprep.subr.bf16.mxu0 0
        %1701 = vmatpush1.bf16.msra.mxu0 %v744
        %1702 = vmatprep.subr.bf16.mxu0 0
        %1703 = vmatpush1.bf16.msra.mxu0 %v741
        %1704 = vmatprep.subr.bf16.mxu0 0
        %1705 = vmatpush2.bf16.msra.mxu0 0
        %1706 = vmatprep.subr.bf16.mxu0 0
        %1707 = vmatpush2.bf16.msra.mxu0 0
        %1708 = vmatprep.subr.bf16.mxu0 0
        %1709 = vmatpush2.bf16.msra.mxu0 0
        %1710 = vmatprep.subr.bf16.mxu0 0
        %1711 = vmatpush2.bf16.msra.mxu0 0
        %1712 = vmatprep.subr.bf16.mxu0 0
        %1713 = vmatpush2.bf16.msra.mxu0 0
        %1714 = vmatprep.subr.bf16.mxu0 0
        %1715 = vmatpush2.bf16.msra.mxu0 0
        %1716 = vmatprep.subr.bf16.mxu0 0
        %1717 = vmatpush2.bf16.msra.mxu0 0
        %1718 = vmatprep.subr.bf16.mxu0 0
        %1719 = vmatpush2.bf16.msra.mxu0 0
        %1720 = vmatprep.mubr.bf16.mxu0 0
        %1721 = vmatmul.mubr.bf16.gmra.mxu0 %v1644
        %v1722 = vpop.f32.mrf.mxu0
        %v1723 = vadd.f32 0.0, %v1722
        %v1724 = vpop.f32.mrf.mxu0
        %v1725 = vpop.f32.mrf.mxu0
        %v1726 = vadd.f32 0.0, %v1725
        %v1727 = vpop.f32.mrf.mxu0
        %1728 = vdwg.mxu0
        %v1729 = vadd.f32 %v1638, %v1680
        %v1730 = vadd.f32 %v1639, %v1682
        %v1731 = vadd.f32 %v1641, %v1684
        %v1732 = vadd.f32 %v1642, %v1686
        %v1733 = vsub.f32 0.0, %v1729
        %v1734 = vsub.f32 0.0, %v1730
        %v1735 = vsub.f32 0.0, %v1731
        %v1736 = vsub.f32 0.0, %v1732
        %v1737 = vmul.f32 %v1733, 1.442695
        %v1738 = vpow.pop %v1737
        %v1739 = vmul.f32 %v1734, 1.442695
        %v1740 = vpow.pop %v1739
        %v1741 = vmul.f32 %v1735, 1.442695
        %v1742 = vpow.pop %v1741
        %v1743 = vmul.f32 %v1736, 1.442695
        %v1744 = vpow.pop %v1743
        %v1745 = vadd.f32 %v1738, 1.0
        %v1746 = vadd.f32 %v1740, 1.0
        %v1747 = vadd.f32 %v1742, 1.0
        %v1748 = vadd.f32 %v1744, 1.0
        %v1749 = vrcp.pop %v1745
        %v1750 = vrcp.pop %v1746
        %v1751 = vrcp.pop %v1747
        %v1752 = vrcp.pop %v1748
        %v1753 = vadd.f32 %v1723, %v411
        %v1754 = vadd.f32 %v1726, %v411
        %v1755 = vmul.f32 %v1749, %v1753
        %v1756 = vmul.f32 %v1751, %v1754
        %v1757 = vadd.f32 %v1640, %v1755
        %v1758 = vadd.f32 %v1643, %v1756
        %v1759 = vtanh.pop %v1757
        %v1760 = vtanh.pop %v1758
        %v1761 = vsub.f32 %v1636, %v1759
        %v1762 = vsub.f32 %v1637, %v1760
        %v1763 = vmul.f32 %v1750, %v1761
        %v1764 = vmul.f32 %v1752, %v1762
        %v1765 = vadd.f32 %v1759, %v1763
        %v1766 = vadd.f32 %v1760, %v1764
        %v1767 = vld [vmem:[#allocation3 + $0x60] sm:$0xff]
        %v1768 = vld [vmem:[#allocation3 + $0x68] sm:$0xff]
        %v1769 = vld [vmem:[#allocation3 + $0x70] sm:$0xff]
        %v1770 = vld [vmem:[#allocation3 + $0x78] sm:$0xff]
        %v1771 = vld [vmem:[#allocation3 + $0x80] sm:$0xff]
        %v1772 = vld [vmem:[#allocation3 + $0x88] sm:$0xff]
        %v1773 = vpack.c.bf16 %v1766, %v1765
        %1774 = vmatprep.subr.bf16.mxu0 %v761
        %1775 = vmatpush1.bf16.msra.mxu0 %v760
        %1776 = vmatprep.subr.bf16.mxu0 %v758
        %1777 = vmatpush1.bf16.msra.mxu0 %v757
        %1778 = vmatprep.subr.bf16.mxu0 %v755
        %1779 = vmatpush1.bf16.msra.mxu0 %v754
        %1780 = vmatprep.subr.bf16.mxu0 %v752
        %1781 = vmatpush1.bf16.msra.mxu0 %v751
        %1782 = vmatprep.subr.bf16.mxu0 %v749
        %1783 = vmatpush1.bf16.msra.mxu0 %v748
        %1784 = vmatprep.subr.bf16.mxu0 %v746
        %1785 = vmatpush1.bf16.msra.mxu0 %v745
        %1786 = vmatprep.subr.bf16.mxu0 %v743
        %1787 = vmatpush1.bf16.msra.mxu0 %v742
        %1788 = vmatprep.subr.bf16.mxu0 %v740
        %1789 = vmatpush1.bf16.msra.mxu0 %v739
        %1790 = vmatprep.subr.bf16.mxu0 0
        %1791 = vmatpush2.bf16.msra.mxu0 0
        %1792 = vmatprep.subr.bf16.mxu0 0
        %1793 = vmatpush2.bf16.msra.mxu0 0
        %1794 = vmatprep.subr.bf16.mxu0 0
        %1795 = vmatpush2.bf16.msra.mxu0 0
        %1796 = vmatprep.subr.bf16.mxu0 0
        %1797 = vmatpush2.bf16.msra.mxu0 0
        %1798 = vmatprep.subr.bf16.mxu0 0
        %1799 = vmatpush2.bf16.msra.mxu0 0
        %1800 = vmatprep.subr.bf16.mxu0 0
        %1801 = vmatpush2.bf16.msra.mxu0 0
        %1802 = vmatprep.subr.bf16.mxu0 0
        %1803 = vmatpush2.bf16.msra.mxu0 0
        %1804 = vmatprep.subr.bf16.mxu0 0
        %1805 = vmatpush2.bf16.msra.mxu0 0
        %1806 = vmatprep.mubr.bf16.mxu0 0
        %1807 = vmatmul.mubr.bf16.gmra.mxu0 %v1773
        %v1808 = vpop.f32.mrf.mxu0
        %v1809 = vadd.f32 0.0, %v1808
        %v1810 = vpop.f32.mrf.mxu0
        %v1811 = vadd.f32 0.0, %v1810
        %v1812 = vpop.f32.mrf.mxu0
        %v1813 = vadd.f32 0.0, %v1812
        %v1814 = vpop.f32.mrf.mxu0
        %v1815 = vadd.f32 0.0, %v1814
        %1816 = vdwg.mxu0
        %1817 = vmatprep.subr.bf16.mxu0 0
        %1818 = vmatpush1.bf16.msra.mxu0 %v762
        %1819 = vmatprep.subr.bf16.mxu0 0
        %1820 = vmatpush1.bf16.msra.mxu0 %v759
        %1821 = vmatprep.subr.bf16.mxu0 0
        %1822 = vmatpush1.bf16.msra.mxu0 %v756
        %1823 = vmatprep.subr.bf16.mxu0 0
        %1824 = vmatpush1.bf16.msra.mxu0 %v753
        %1825 = vmatprep.subr.bf16.mxu0 0
        %1826 = vmatpush1.bf16.msra.mxu0 %v750
        %1827 = vmatprep.subr.bf16.mxu0 0
        %1828 = vmatpush1.bf16.msra.mxu0 %v747
        %1829 = vmatprep.subr.bf16.mxu0 0
        %1830 = vmatpush1.bf16.msra.mxu0 %v744
        %1831 = vmatprep.subr.bf16.mxu0 0
        %1832 = vmatpush1.bf16.msra.mxu0 %v741
        %1833 = vmatprep.subr.bf16.mxu0 0
        %1834 = vmatpush2.bf16.msra.mxu0 0
        %1835 = vmatprep.subr.bf16.mxu0 0
        %1836 = vmatpush2.bf16.msra.mxu0 0
        %1837 = vmatprep.subr.bf16.mxu0 0
        %1838 = vmatpush2.bf16.msra.mxu0 0
        %1839 = vmatprep.subr.bf16.mxu0 0
        %1840 = vmatpush2.bf16.msra.mxu0 0
        %1841 = vmatprep.subr.bf16.mxu0 0
        %1842 = vmatpush2.bf16.msra.mxu0 0
        %1843 = vmatprep.subr.bf16.mxu0 0
        %1844 = vmatpush2.bf16.msra.mxu0 0
        %1845 = vmatprep.subr.bf16.mxu0 0
        %1846 = vmatpush2.bf16.msra.mxu0 0
        %1847 = vmatprep.subr.bf16.mxu0 0
        %1848 = vmatpush2.bf16.msra.mxu0 0
        %1849 = vmatprep.mubr.bf16.mxu0 0
        %1850 = vmatmul.mubr.bf16.gmra.mxu0 %v1773
        %v1851 = vpop.f32.mrf.mxu0
        %v1852 = vadd.f32 0.0, %v1851
        %v1853 = vpop.f32.mrf.mxu0
        %v1854 = vpop.f32.mrf.mxu0
        %v1855 = vadd.f32 0.0, %v1854
        %v1856 = vpop.f32.mrf.mxu0
        %1857 = vdwg.mxu0
        %v1858 = vadd.f32 %v1767, %v1809
        %v1859 = vadd.f32 %v1768, %v1811
        %v1860 = vadd.f32 %v1770, %v1813
        %v1861 = vadd.f32 %v1771, %v1815
        %v1862 = vsub.f32 0.0, %v1858
        %v1863 = vsub.f32 0.0, %v1859
        %v1864 = vsub.f32 0.0, %v1860
        %v1865 = vsub.f32 0.0, %v1861
        %v1866 = vmul.f32 %v1862, 1.442695
        %v1867 = vpow.pop %v1866
        %v1868 = vmul.f32 %v1863, 1.442695
        %v1869 = vpow.pop %v1868
        %v1870 = vmul.f32 %v1864, 1.442695
        %v1871 = vpow.pop %v1870
        %v1872 = vmul.f32 %v1865, 1.442695
        %v1873 = vpow.pop %v1872
        %v1874 = vadd.f32 %v1867, 1.0
        %v1875 = vadd.f32 %v1869, 1.0
        %v1876 = vadd.f32 %v1871, 1.0
        %v1877 = vadd.f32 %v1873, 1.0
        %v1878 = vrcp.pop %v1874
        %v1879 = vrcp.pop %v1875
        %v1880 = vrcp.pop %v1876
        %v1881 = vrcp.pop %v1877
        %v1882 = vadd.f32 %v1852, %v411
        %v1883 = vadd.f32 %v1855, %v411
        %v1884 = vmul.f32 %v1878, %v1882
        %v1885 = vmul.f32 %v1880, %v1883
        %v1886 = vadd.f32 %v1769, %v1884
        %v1887 = vadd.f32 %v1772, %v1885
        %v1888 = vtanh.pop %v1886
        %v1889 = vtanh.pop %v1887
        %v1890 = vsub.f32 %v1765, %v1888
        %v1891 = vsub.f32 %v1766, %v1889
        %v1892 = vmul.f32 %v1879, %v1890
        %v1893 = vmul.f32 %v1881, %v1891
        %v1894 = vadd.f32 %v1888, %v1892
        %v1895 = vadd.f32 %v1889, %v1893
        %v1896 = vld [vmem:[#allocation3 + $0x90] sm:$0xff]
        %v1897 = vld [vmem:[#allocation3 + $0x98] sm:$0xff]
        %v1898 = vld [vmem:[#allocation3 + $0xa0] sm:$0xff]
        %v1899 = vld [vmem:[#allocation3 + $0xa8] sm:$0xff]
        %v1900 = vld [vmem:[#allocation3 + $0xb0] sm:$0xff]
        %v1901 = vld [vmem:[#allocation3 + $0xb8] sm:$0xff]
        %v1902 = vpack.c.bf16 %v1895, %v1894
        %1903 = vmatprep.subr.bf16.mxu0 %v761
        %1904 = vmatpush1.bf16.msra.mxu0 %v760
        %1905 = vmatprep.subr.bf16.mxu0 %v758
        %1906 = vmatpush1.bf16.msra.mxu0 %v757
        %1907 = vmatprep.subr.bf16.mxu0 %v755
        %1908 = vmatpush1.bf16.msra.mxu0 %v754
        %1909 = vmatprep.subr.bf16.mxu0 %v752
        %1910 = vmatpush1.bf16.msra.mxu0 %v751
        %1911 = vmatprep.subr.bf16.mxu0 %v749
        %1912 = vmatpush1.bf16.msra.mxu0 %v748
        %1913 = vmatprep.subr.bf16.mxu0 %v746
        %1914 = vmatpush1.bf16.msra.mxu0 %v745
        %1915 = vmatprep.subr.bf16.mxu0 %v743
        %1916 = vmatpush1.bf16.msra.mxu0 %v742
        %1917 = vmatprep.subr.bf16.mxu0 %v740
        %1918 = vmatpush1.bf16.msra.mxu0 %v739
        %1919 = vmatprep.subr.bf16.mxu0 0
        %1920 = vmatpush2.bf16.msra.mxu0 0
        %1921 = vmatprep.subr.bf16.mxu0 0
        %1922 = vmatpush2.bf16.msra.mxu0 0
        %1923 = vmatprep.subr.bf16.mxu0 0
        %1924 = vmatpush2.bf16.msra.mxu0 0
        %1925 = vmatprep.subr.bf16.mxu0 0
        %1926 = vmatpush2.bf16.msra.mxu0 0
        %1927 = vmatprep.subr.bf16.mxu0 0
        %1928 = vmatpush2.bf16.msra.mxu0 0
        %1929 = vmatprep.subr.bf16.mxu0 0
        %1930 = vmatpush2.bf16.msra.mxu0 0
        %1931 = vmatprep.subr.bf16.mxu0 0
        %1932 = vmatpush2.bf16.msra.mxu0 0
        %1933 = vmatprep.subr.bf16.mxu0 0
        %1934 = vmatpush2.bf16.msra.mxu0 0
        %1935 = vmatprep.mubr.bf16.mxu0 0
        %1936 = vmatmul.mubr.bf16.gmra.mxu0 %v1902
        %v1937 = vpop.f32.mrf.mxu0
        %v1938 = vadd.f32 0.0, %v1937
        %v1939 = vpop.f32.mrf.mxu0
        %v1940 = vadd.f32 0.0, %v1939
        %v1941 = vpop.f32.mrf.mxu0
        %v1942 = vadd.f32 0.0, %v1941
        %v1943 = vpop.f32.mrf.mxu0
        %v1944 = vadd.f32 0.0, %v1943
        %1945 = vdwg.mxu0
        %1946 = vmatprep.subr.bf16.mxu0 0
        %1947 = vmatpush1.bf16.msra.mxu0 %v762
        %1948 = vmatprep.subr.bf16.mxu0 0
        %1949 = vmatpush1.bf16.msra.mxu0 %v759
        %1950 = vmatprep.subr.bf16.mxu0 0
        %1951 = vmatpush1.bf16.msra.mxu0 %v756
        %1952 = vmatprep.subr.bf16.mxu0 0
        %1953 = vmatpush1.bf16.msra.mxu0 %v753
        %1954 = vmatprep.subr.bf16.mxu0 0
        %1955 = vmatpush1.bf16.msra.mxu0 %v750
        %1956 = vmatprep.subr.bf16.mxu0 0
        %1957 = vmatpush1.bf16.msra.mxu0 %v747
        %1958 = vmatprep.subr.bf16.mxu0 0
        %1959 = vmatpush1.bf16.msra.mxu0 %v744
        %1960 = vmatprep.subr.bf16.mxu0 0
        %1961 = vmatpush1.bf16.msra.mxu0 %v741
        %1962 = vmatprep.subr.bf16.mxu0 0
        %1963 = vmatpush2.bf16.msra.mxu0 0
        %1964 = vmatprep.subr.bf16.mxu0 0
        %1965 = vmatpush2.bf16.msra.mxu0 0
        %1966 = vmatprep.subr.bf16.mxu0 0
        %1967 = vmatpush2.bf16.msra.mxu0 0
        %1968 = vmatprep.subr.bf16.mxu0 0
        %1969 = vmatpush2.bf16.msra.mxu0 0
        %1970 = vmatprep.subr.bf16.mxu0 0
        %1971 = vmatpush2.bf16.msra.mxu0 0
        %1972 = vmatprep.subr.bf16.mxu0 0
        %1973 = vmatpush2.bf16.msra.mxu0 0
        %1974 = vmatprep.subr.bf16.mxu0 0
        %1975 = vmatpush2.bf16.msra.mxu0 0
        %1976 = vmatprep.subr.bf16.mxu0 0
        %1977 = vmatpush2.bf16.msra.mxu0 0
        %1978 = vmatprep.mubr.bf16.mxu0 0
        %1979 = vmatmul.mubr.bf16.gmra.mxu0 %v1902
        %v1980 = vpop.f32.mrf.mxu0
        %v1981 = vadd.f32 0.0, %v1980
        %v1982 = vpop.f32.mrf.mxu0
        %v1983 = vpop.f32.mrf.mxu0
        %v1984 = vadd.f32 0.0, %v1983
        %v1985 = vpop.f32.mrf.mxu0
        %1986 = vdwg.mxu0
        %v1987 = vadd.f32 %v1896, %v1938
        %v1988 = vadd.f32 %v1897, %v1940
        %v1989 = vadd.f32 %v1899, %v1942
        %v1990 = vadd.f32 %v1900, %v1944
        %v1991 = vsub.f32 0.0, %v1987
        %v1992 = vsub.f32 0.0, %v1988
        %v1993 = vsub.f32 0.0, %v1989
        %v1994 = vsub.f32 0.0, %v1990
        %v1995 = vmul.f32 %v1991, 1.442695
        %v1996 = vpow.pop %v1995
        %v1997 = vmul.f32 %v1992, 1.442695
        %v1998 = vpow.pop %v1997
        %v1999 = vmul.f32 %v1993, 1.442695
        %v2000 = vpow.pop %v1999
        %v2001 = vmul.f32 %v1994, 1.442695
        %v2002 = vpow.pop %v2001
        %v2003 = vadd.f32 %v1996, 1.0
        %v2004 = vadd.f32 %v1998, 1.0
        %v2005 = vadd.f32 %v2000, 1.0
        %v2006 = vadd.f32 %v2002, 1.0
        %v2007 = vrcp.pop %v2003
        %v2008 = vrcp.pop %v2004
        %v2009 = vrcp.pop %v2005
        %v2010 = vrcp.pop %v2006
        %v2011 = vadd.f32 %v1981, %v411
        %v2012 = vadd.f32 %v1984, %v411
        %v2013 = vmul.f32 %v2007, %v2011
        %v2014 = vmul.f32 %v2009, %v2012
        %v2015 = vadd.f32 %v1898, %v2013
        %v2016 = vadd.f32 %v1901, %v2014
        %v2017 = vtanh.pop %v2015
        %v2018 = vtanh.pop %v2016
        %v2019 = vsub.f32 %v1894, %v2017
        %v2020 = vsub.f32 %v1895, %v2018
        %v2021 = vmul.f32 %v2008, %v2019
        %v2022 = vmul.f32 %v2010, %v2020
        %v2023 = vadd.f32 %v2017, %v2021
        %v2024 = vadd.f32 %v2018, %v2022
        %s2025 = smul.u32 %s29, 8
        %p2026 = scmp.lt.s32.totalorder %s2025, 8
        %s2027 = scalar_select %p2026, 1, 0
        %v2028 = vstv %s2027
        %vm2029 = vcmp.eq.s32.totalorder %v2028, 1
        %v2030 = vsel %vm2029, %v2023, %v1304
        %v2031 = vsel %vm2029, %v2024, %v1305
        %2032 = vst [vmem:[#allocation2] sm:$0xff] %v2030
        %2033 = vst [vmem:[#allocation2 + $0x8] sm:$0xff] %v2031
        %p2034 = scmp.eq.s32.totalorder %s29, 1
        // Predicated region
        $region69: #{tpu_custom_call.1} parent=47 // pred_check
          %p2035 = pneg %p2034
        $region70: #{tpu_custom_call.1} parent=47 // pred_check_branch
          %2037 = sbr.rel (%p2035) target = $region72
        $region71: #{tpu_custom_call.1} parent=47 // pred_region
          %v2038 = vpack.c.bf16 %v2031, %v2030
          %v2039 = vld [vmem:[#allocation11] sm:$0xf]
          %v2040 = vld [vmem:[#allocation11 + $0x4] sm:$0xf]
          %v2041 = vld [vmem:[#allocation11 + $0x8] sm:$0xf]
          %v2042 = vld [vmem:[#allocation11 + $0xc] sm:$0xf]
          %v2043 = vld [vmem:[#allocation11 + $0x10] sm:$0xf]
          %v2044 = vld [vmem:[#allocation11 + $0x14] sm:$0xf]
          %v2045 = vld [vmem:[#allocation11 + $0x18] sm:$0xf]
          %v2046 = vld [vmem:[#allocation11 + $0x1c] sm:$0xf]
          %v2047 = vld [vmem:[#allocation11 + $0x20] sm:$0xf]
          %v2048 = vld [vmem:[#allocation11 + $0x24] sm:$0xf]
          %v2049 = vld [vmem:[#allocation11 + $0x28] sm:$0xf]
          %v2050 = vld [vmem:[#allocation11 + $0x2c] sm:$0xf]
          %v2051 = vld [vmem:[#allocation11 + $0x30] sm:$0xf]
          %v2052 = vld [vmem:[#allocation11 + $0x34] sm:$0xf]
          %v2053 = vld [vmem:[#allocation11 + $0x38] sm:$0xf]
          %v2054 = vld [vmem:[#allocation11 + $0x3c] sm:$0xf]
          %v2055 = vld [vmem:[%s6] sm:$0x1]
          %v2057 = vlaneseq
          %v2058 = vshrl.u32 %v2057, 7
          %v2059 = vsub.s32 0, %v2058
          %v2060 = vrot.slane %v2055, %v2059
          %v2078 = vunpack.c.l.b16 %v2039
          %v2079 = vunpack.c.l.b16 %v2040
          %v2080 = vunpack.c.l.b16 %v2041
          %v2081 = vunpack.c.l.b16 %v2042
          %v2082 = vunpack.c.l.b16 %v2043
          %v2083 = vunpack.c.l.b16 %v2044
          %v2084 = vunpack.c.l.b16 %v2045
          %v2085 = vunpack.c.l.b16 %v2046
          %v2086 = vunpack.c.l.b16 %v2047
          %v2087 = vunpack.c.l.b16 %v2048
          %v2088 = vunpack.c.l.b16 %v2049
          %v2089 = vunpack.c.l.b16 %v2050
          %v2090 = vunpack.c.l.b16 %v2051
          %v2091 = vunpack.c.l.b16 %v2052
          %v2092 = vunpack.c.l.b16 %v2053
          %v2093 = vunpack.c.l.b16 %v2054
          %v2094 = vpack.c.b16 %v2079, %v2078
          %v2095 = vpack.c.b16 %v2081, %v2080
          %v2096 = vpack.c.b16 %v2083, %v2082
          %v2097 = vpack.c.b16 %v2085, %v2084
          %v2098 = vpack.c.b16 %v2087, %v2086
          %v2099 = vpack.c.b16 %v2089, %v2088
          %v2100 = vpack.c.b16 %v2091, %v2090
          %v2101 = vpack.c.b16 %v2093, %v2092
          %2110 = vmatprep.subr.bf16.mxu0 0
          %2111 = vmatpush1.bf16.msra.mxu0 %v2101
          %2112 = vmatprep.subr.bf16.mxu0 0
          %2113 = vmatpush1.bf16.msra.mxu0 %v2100
          %2114 = vmatprep.subr.bf16.mxu0 0
          %2115 = vmatpush1.bf16.msra.mxu0 %v2099
          %2116 = vmatprep.subr.bf16.mxu0 0
          %2117 = vmatpush1.bf16.msra.mxu0 %v2098
          %2118 = vmatprep.subr.bf16.mxu0 0
          %2119 = vmatpush1.bf16.msra.mxu0 %v2097
          %2120 = vmatprep.subr.bf16.mxu0 0
          %2121 = vmatpush1.bf16.msra.mxu0 %v2096
          %2122 = vmatprep.subr.bf16.mxu0 0
          %2123 = vmatpush1.bf16.msra.mxu0 %v2095
          %2124 = vmatprep.subr.bf16.mxu0 0
          %2125 = vmatpush1.bf16.msra.mxu0 %v2094
          %2126 = vmatprep.subr.bf16.mxu0 0
          %2127 = vmatpush2.bf16.msra.mxu0 0
          %2128 = vmatprep.subr.bf16.mxu0 0
          %2129 = vmatpush2.bf16.msra.mxu0 0
          %2130 = vmatprep.subr.bf16.mxu0 0
          %2131 = vmatpush2.bf16.msra.mxu0 0
          %2132 = vmatprep.subr.bf16.mxu0 0
          %2133 = vmatpush2.bf16.msra.mxu0 0
          %2134 = vmatprep.subr.bf16.mxu0 0
          %2135 = vmatpush2.bf16.msra.mxu0 0
          %2136 = vmatprep.subr.bf16.mxu0 0
          %2137 = vmatpush2.bf16.msra.mxu0 0
          %2138 = vmatprep.subr.bf16.mxu0 0
          %2139 = vmatpush2.bf16.msra.mxu0 0
          %2140 = vmatprep.subr.bf16.mxu0 0
          %2141 = vmatpush2.bf16.msra.mxu0 0
          %2142 = vmatprep.mubr.bf16.mxu0 0
          %2143 = vmatmul.mubr.bf16.gmra.mxu0 %v2038
          %v2144 = vpop.f32.mrf.mxu0
          %v2145 = vadd.f32 %v2060, %v2144
          %v2146 = vpop.f32.mrf.mxu0
          %v2147 = vpop.f32.mrf.mxu0
          %v2148 = vadd.f32 %v2060, %v2147
          %v2149 = vpop.f32.mrf.mxu0
          %2150 = vdwg.mxu0
          %2151 = vst [vmem:[#allocation13] sm:$0xff] %v2145
          %2152 = vst [vmem:[#allocation13 + $0x8] sm:$0xff] %v2148
        $region72: #{tpu_custom_call.1} parent=47 // pred_fallthru
          _
        // Predicated region
        $region73: #{tpu_custom_call.1} parent=47 // pred_check
          %p2153 = pneg %p212
        $region74: #{tpu_custom_call.1} parent=47 // pred_check_branch
          %2155 = sbr.rel (%p2153) target = $region76
        $region75: #{tpu_custom_call.1} parent=47 // pred_region
          %s2156 = smul.u32 2, %s28
          %s2158 = ssub.s32 256, 256
          %2159 = vsyncadd [#allocation7], %s2158
          %s2160 = smul.addr %s2156, 128
          %s2161 = scalar_lea.hbm %s7, %s2160
          %s2162 = sshll.u32 [#allocation13], 4
          %s2163 = int_to_ptr.vmem [resolvable:$true] %s2162
          %2168 = dma.vmem_to_hbm [thread:$0]  %s2163, 256, %s2161, [#allocation7], 128, 128, 8
        $region76: #{tpu_custom_call.1} parent=47 // pred_fallthru
          _
        // Predicated region
        $region77: #{tpu_custom_call.1} parent=47 // pred_check
          %p2169 = pneg %p212
        $region78: #{tpu_custom_call.1} parent=47 // pred_check_branch
          %2171 = sbr.rel (%p2169) target = $region80
        $region79: #{tpu_custom_call.1} parent=47 // pred_region
          %2172 = dma.done [#allocation7], 256
        $region80: #{tpu_custom_call.1} parent=47 // pred_fallthru
          _
      $region48: #{tpu_custom_call.1} parent=5 // pred_fallthru
        _
      %p2173 = scmp.le.s32.totalorder 2, %s19
      // Predicated region
      $region81: #{tpu_custom_call.1} parent=5 // pred_check
        %p2174 = pneg %p2173
      $region82: #{tpu_custom_call.1} parent=5 // pred_check_branch
        %2176 = sbr.rel (%p2174) target = $region84
      $region83: #{tpu_custom_call.1} parent=5 // pred_region
        %s2177 = ssub.s32 %s19, 2
      $region84: #{tpu_custom_call.1} parent=5 // pred_fallthru
        _
    $region6: #{tpu_custom_call.1} parent=1 // loop_footer
      %s23 = sadd.s32 1, %s19
    $region7: #{tpu_custom_call.1} parent=1 // loop_footer_branch
      %18 = sbr.rel target = $region3
    $region8: #{tpu_custom_call.1} parent=1 // loop_exit
      _
    %2178 = vsyncpa [#allocation6], 1
    %s2179 = scalar_lea.sflag [#allocation6], 1
    %2180 = vsyncpa %s2179, 1
    %2181 = vsyncpa [#allocation9], 1
    %2182 = vsyncpa [#allocation12], 1
    %2183 = vsyncpa [#allocation7], 1
    %s2184 = scalar_lea.sflag [#allocation7], 1
    %2185 = vsyncpa %s2184, 1

</llo_original>
